<compile_context>
chip_gen: v6e
topology: v6e:2x2x1
jax: 0.10.0
libtpu: 0.0.40
codegen_flags: <defaults>
</compile_context>

<pallas_src>
import functools

import jax
import jax.numpy as jnp
from jax.experimental import pallas as pl
from jax.experimental.pallas import tpu as pltpu


def _lane_shift(x, s, total):
    """Return y with y[..., l] = x[..., (l + s) % total]  (s is a static int).

    Wrapped lanes only ever end up in output lanes that are masked to zero or
    sliced off in the wrapper, so circular wrap is safe.  (A single
    pltpu.roll(x, (-s) % total, axis=-1) is the one-op XLU equivalent; the
    slice+concat form is kept for unambiguous semantics — both ride on
    non-store issue slots.)
    """
    s = s % total
    if s == 0:
        return x
    return jnp.concatenate([x[..., s:], x[..., :s]], axis=-1)


def _fused_ae_kernel(x_ref, w_ref, b_ref, o_ref, *scratch,
                     layers, zero_borders, total, span, nbatch, wd):
    """Whole 4-layer conv+sigmoid autoencoder, all batch elements, one shot.

    Layout: every activation j lives in a (C_j, Dpad_j, total) f32 buffer.
    D sits on sublanes; (batch, H, W) are folded onto the lane axis with a
    fixed per-batch stride of `span` lanes (total = nbatch*span, a multiple
    of 128).  Within each batch span the padded rows occupy lanes
    [0, (H_j + 2*p_j)*wd); trailing lanes are don't-care.

    x_ref:   (C0, D0, total)    VMEM
    w_ref:   (sum weights,)     SMEM (flat, packed per layer)
    b_ref:   (sum biases,)      SMEM
    o_ref:   (CL, DL, total)    VMEM
    scratch: padded VMEM buffers for the intermediate activations
    layers:  static per-layer configs
             (src, dst, w_off, b_off, cout, cin, k, dout, p_out, lo, hi)
    """
    bufs = (x_ref,) + tuple(scratch) + (o_ref,)

    # Zero only the pad *sublane* borders of the padded scratch buffers; their
    # interior rows (incl. the pad lanes) are fully rewritten every call by the
    # masked, lane-dense stores below.
    for (si, c, p, dcore) in zero_borders:
        zrow = jnp.zeros((c, p, total), jnp.float32)
        scratch[si][:, 0:p, :] = zrow
        scratch[si][:, p + dcore:p + dcore + p, :] = zrow

    for (src, dst, w_off, b_off, cout, cin, k, dout, p_out, lo, hi) in layers:
        src_ref, dst_ref = bufs[src], bufs[dst]
        accs = [None] * cout
        for ci in range(cin):
            xc = src_ref[ci]                                    # (Dpad_src, total)
            for kh in range(k):
                # destination lane l reads source lane l + (kh - p_out)*wd;
                # hoisted once per (ci, kh), reused across kd and cout.
                xs = _lane_shift(xc, (kh - p_out) * wd, total)
                for kd in range(k):
                    xdh = xs[kd:kd + dout, :]                   # (dout, total)
                    for co in range(cout):
                        wv = w_ref[w_off + ((co * cin + ci) * k + kd) * k + kh]
                        t = xdh * wv
                        accs[co] = t if accs[co] is None else accs[co] + t

        # 0/1 lane mask keeping the destination's zero padding / don't-care
        # lanes at exactly 0 (only needed when the consumer is a ConvTranspose).
        maskf = None
        if p_out > 0:
            lane = jax.lax.broadcasted_iota(jnp.int32, (dout, total), 1)
            m = (lane >= lo) & (lane < hi)
            for b in range(1, nbatch):
                m = m | ((lane >= b * span + lo) & (lane < b * span + hi))
            maskf = jnp.where(m, 1.0, 0.0)

        for co in range(cout):
            z = accs[co] + b_ref[b_off + co]
            y = 0.5 * (jnp.tanh(0.5 * z) + 1.0)                 # sigmoid via one EUP tanh
            if maskf is not None:
                y = y * maskf
            # full-width, lane-dense (unmasked) store
            dst_ref[co, p_out:p_out + dout, :] = y.astype(dst_ref.dtype)


def build_forward(down_params, up_params, x_shape):
    """Build a jitted forward fn; weight conversion/packing and all static
    layout bookkeeping is hoisted here (runs once per model)."""
    n, c0, d0, h0, wd = x_shape

    # ConvTranspose == conv with channel-transposed, spatially flipped kernel.
    conv_layers = []   # (w4 (O,I,kD,kH), b, padding needed on this layer's input)
    for (w, b) in down_params:                       # Conv3d weight: (O, I, kD, kH, kW)
        w = jnp.asarray(w, jnp.float32)
        assert w.shape[4] == 1, "kernel W-extent must be 1 for this layout"
        conv_layers.append((w[:, :, :, :, 0], jnp.asarray(b, jnp.float32), 0))
    for (w, b) in up_params:                         # ConvTranspose3d weight: (I, O, kD, kH, kW)
        w = jnp.asarray(w, jnp.float32)
        assert w.shape[4] == 1, "kernel W-extent must be 1 for this layout"
        k = w.shape[2]
        w4 = jnp.transpose(w[:, :, ::-1, ::-1, 0], (1, 0, 2, 3))
        conv_layers.append((w4, jnp.asarray(b, jnp.float32), k - 1))

    wvec = jnp.concatenate([w.reshape(-1) for (w, _, _) in conv_layers])
    bvec = jnp.concatenate([b.reshape(-1) for (_, b, _) in conv_layers])

    # ---- static shape / layout bookkeeping ----
    L = len(conv_layers)
    pads = [p for (_, _, p) in conv_layers] + [0]    # pads[j]: padding of act j needed by its consumer
    assert pads[0] == 0, "first layer must not require padded input"

    act = [(c0, d0, h0)]                             # logical (unpadded) activation dims
    for (w4, _, p) in conv_layers:
        cout, cin, k, _ = w4.shape
        ci_, di_, hi_ = act[-1]
        assert cin == ci_
        act.append((cout, di_ + 2 * p - k + 1, hi_ + 2 * p - k + 1))

    # Per-batch lane stride: big enough for every (padded) activation and chosen
    # so the folded lane axis nbatch*span is a multiple of 128 (=> all stores
    # are full, unmasked vreg-lane rows).
    max_lane = max((h + 2 * pads[j]) * wd for j, (_, _, h) in enumerate(act))
    span = max_lane
    while (n * span) % 128 != 0:
        span += 1
    total = n * span

    scratch_shapes = []
    zero_borders = []
    for j in range(1, L):
        cj, dj, hj = act[j]
        pj = pads[j]
        scratch_shapes.append((cj, dj + 2 * pj, total))
        if pj > 0:
            zero_borders.append((j - 1, cj, pj, dj))

    layers_cfg = []
    w_off = b_off = 0
    for li, (w4, _, _) in enumerate(conv_layers):
        cout, cin, k, _ = w4.shape
        dout, hout = act[li + 1][1], act[li + 1][2]
        p_out = pads[li + 1]
        layers_cfg.append((li, li + 1, w_off, b_off, cout, cin, k,
                           dout, p_out, p_out * wd, (p_out + hout) * wd))
        w_off += cout * cin * k * k
        b_off += cout

    cL, dL, hL = act[L]
    kernel = functools.partial(_fused_ae_kernel,
                               layers=tuple(layers_cfg),
                               zero_borders=tuple(zero_borders),
                               total=total, span=span, nbatch=n, wd=wd)

    # Single gridless invocation: on single-TC v5e/v6e this removes the old
    # per-batch grid step; the lane-folded batch doubles lane occupancy.  On
    # v7x a core_map 2-TC split is possible but the forward is launch-overhead
    # bound at ~60k MACs, so the single-shot form is kept.
    pallas_fn = pl.pallas_call(
        kernel,
        out_shape=jax.ShapeDtypeStruct((cL, dL, total), jnp.float32),
        in_specs=[
            pl.BlockSpec(memory_space=pltpu.MemorySpace.VMEM),
            pl.BlockSpec(memory_space=pltpu.MemorySpace.SMEM),
            pl.BlockSpec(memory_space=pltpu.MemorySpace.SMEM),
        ],
        out_specs=pl.BlockSpec(memory_space=pltpu.MemorySpace.VMEM),
        scratch_shapes=[pltpu.VMEM(s, jnp.float32) for s in scratch_shapes],
    )

    @jax.jit
    def fwd(x):
        # fold (batch, H, W) onto the lane axis: (C, D, n*span),
        # batch b at lanes [b*span, b*span + H*W)
        xr = x.astype(jnp.float32).reshape(n, c0, d0, h0 * wd)
        xr = jnp.pad(xr, ((0, 0), (0, 0), (0, 0), (0, span - h0 * wd)))
        x2 = jnp.transpose(xr, (1, 2, 0, 3)).reshape(c0, d0, total)
        y = pallas_fn(x2, wvec, bvec)
        # un-fold: (C, D, n, span) -> slice valid lanes -> (n, C, D, H, W)
        yr = y.reshape(cL, dL, n, span)[:, :, :, :hL * wd]
        return jnp.transpose(yr, (2, 0, 1, 3)).reshape(n, cL, dL, hL, wd)

    return fwd


# ---------------- pure-JAX reference (for correctness check only) ----------------
def _conv3d_ref(x, w, b):
    y = jax.lax.conv_general_dilated(
        x, w, window_strides=(1, 1, 1), padding="VALID",
        dimension_numbers=("NCDHW", "OIDHW", "NCDHW"))
    return y + b[None, :, None, None, None]


def _convT3d_ref(x, w, b):
    kd, kh, kw = w.shape[2], w.shape[3], w.shape[4]
    w_conv = jnp.transpose(w[:, :, ::-1, ::-1, ::-1], (1, 0, 2, 3, 4))
    y = jax.lax.conv_general_dilated(
        x, w_conv, window_strides=(1, 1, 1),
        padding=[(kd - 1, kd - 1), (kh - 1, kh - 1), (kw - 1, kw - 1)],
        dimension_numbers=("NCDHW", "OIDHW", "NCDHW"))
    return y + b[None, :, None, None, None]


def autoencoder_forward_ref(x, down_params, up_params):
    sig = lambda t: 1.0 / (1.0 + jnp.exp(-t))
    for w, b in down_params:
        x = sig(_conv3d_ref(x, w, b))
    for w, b in up_params:
        x = sig(_convT3d_ref(x, w, b))
    return x


# ---------------- deterministic parameter construction ----------------
def make_params(key):
    # fixed trial choices: n_layers=2, k0=3, k1=3, n_filter_l1=2
    k0, k1, nf1 = 3, 3, 2
    down_w_shapes = [(1, 5, k0, k0, 1), (nf1, 1, k1, k1, 1)]   # Conv3d: (O, I, kD, kH, kW)
    up_w_shapes = [(nf1, 1, k1, k1, 1), (1, 5, k0, k0, 1)]     # ConvTranspose3d: (I, O, kD, kH, kW)
    down_b_sizes = [1, nf1]
    up_b_sizes = [1, 5]

    keys = jax.random.split(key, 8)
    down, up = [], []
    for i, (ws, bs) in enumerate(zip(down_w_shapes, down_b_sizes)):
        w = 0.5 + 0.7 * jax.random.normal(keys[2 * i], ws, jnp.float32)      # normal_(mean=0.5, std=0.7)
        b = 0.1 * jax.random.uniform(keys[2 * i + 1], (bs,), jnp.float32, -1.0, 1.0)
        down.append((w, b))
    for i, (ws, bs) in enumerate(zip(up_w_shapes, up_b_sizes)):
        w = 0.5 + 0.7 * jax.random.normal(keys[4 + 2 * i], ws, jnp.float32)  # normal_(mean=0.5, std=0.7)
        b = 0.1 * jax.random.uniform(keys[4 + 2 * i + 1], (bs,), jnp.float32, -1.0, 1.0)
        up.append((w, b))
    return down, up


if __name__ == "__main__":
    key = jax.random.PRNGKey(0)
    kx, kp = jax.random.split(key)

    # (N, C=5, D, H, W) -- NCDHW, matching PyTorch Conv3d input
    x = jax.random.normal(kx, (2, 5, 12, 12, 4), jnp.float32)
    down_params, up_params = make_params(kp)

    fwd = build_forward(down_params, up_params, x.shape)
    out = jax.block_until_ready(fwd(x))

    ref = autoencoder_forward_ref(x, down_params, up_params)
    assert out.shape == x.shape, f"shape mismatch: {out.shape} vs {x.shape}"
    max_err = float(jnp.max(jnp.abs(out - ref)))
    assert max_err < 1e-4, f"max abs err {max_err}"

    print("KERNEL_OK")
</pallas_src>

<mosaic_0001>
module attributes {stable_mosaic.version = 11 : i64} {
  func.func @_fused_ae_kernel(%arg0: memref<5x12x128xf32, #tpu.memory_space<vmem>>, %arg1: memref<126xf32, #tpu.memory_space<smem>>, %arg2: memref<9xf32, #tpu.memory_space<smem>>, %arg3: memref<5x12x128xf32, #tpu.memory_space<vmem>>, %arg4: memref<1x10x128xf32, #tpu.memory_space<vmem>>, %arg5: memref<2x12x128xf32, #tpu.memory_space<vmem>>, %arg6: memref<1x14x128xf32, #tpu.memory_space<vmem>>) attributes {dimension_semantics = [], scalar_prefetch = 0 : i64, scratch_operands = 3 : i64, tpu.core_type = #tpu.core_type<tc>} {
    %cst = arith.constant 0.000000e+00 : f32
    %0 = vector.broadcast %cst : f32 to vector<2x2x128xf32>
    %c0 = arith.constant 0 : index
    %c0_0 = arith.constant 0 : index
    %c0_1 = arith.constant 0 : index
    %1 = vector.load %arg5[%c0, %c0_0, %c0_1] : memref<2x12x128xf32, #tpu.memory_space<vmem>>, vector<2x2x128xf32>
    tpu.vector_store %arg5[%c0, %c0_0, %c0_1], %0 {strides = array<i32>} : memref<2x12x128xf32, #tpu.memory_space<vmem>>, vector<2x2x128xf32>,
    %c0_2 = arith.constant 0 : index
    %c10 = arith.constant 10 : index
    %c0_3 = arith.constant 0 : index
    %2 = vector.load %arg5[%c0_2, %c10, %c0_3] : memref<2x12x128xf32, #tpu.memory_space<vmem>>, vector<2x2x128xf32>
    tpu.vector_store %arg5[%c0_2, %c10, %c0_3], %0 {strides = array<i32>} : memref<2x12x128xf32, #tpu.memory_space<vmem>>, vector<2x2x128xf32>,
    %cst_4 = arith.constant 0.000000e+00 : f32
    %3 = vector.broadcast %cst_4 : f32 to vector<1x2x128xf32>
    %c0_5 = arith.constant 0 : index
    %c0_6 = arith.constant 0 : index
    %c0_7 = arith.constant 0 : index
    %4 = vector.load %arg6[%c0_5, %c0_6, %c0_7] : memref<1x14x128xf32, #tpu.memory_space<vmem>>, vector<1x2x128xf32>
    tpu.vector_store %arg6[%c0_5, %c0_6, %c0_7], %3 {strides = array<i32>} : memref<1x14x128xf32, #tpu.memory_space<vmem>>, vector<1x2x128xf32>,
    %c0_8 = arith.constant 0 : index
    %c12 = arith.constant 12 : index
    %c0_9 = arith.constant 0 : index
    %5 = vector.load %arg6[%c0_8, %c12, %c0_9] : memref<1x14x128xf32, #tpu.memory_space<vmem>>, vector<1x2x128xf32>
    tpu.vector_store %arg6[%c0_8, %c12, %c0_9], %3 {strides = array<i32>} : memref<1x14x128xf32, #tpu.memory_space<vmem>>, vector<1x2x128xf32>,
    %c0_10 = arith.constant 0 : index
    %c0_11 = arith.constant 0 : index
    %c0_12 = arith.constant 0 : index
    %6 = vector.load %arg0[%c0_10, %c0_11, %c0_12] : memref<5x12x128xf32, #tpu.memory_space<vmem>>, vector<1x12x128xf32>
    %7 = vector.shape_cast %6 : vector<1x12x128xf32> to vector<12x128xf32>
    %8 = vector.extract_strided_slice %7 {offsets = [0, 0], sizes = [10, 128], strides = [1, 1]} : vector<12x128xf32> to vector<10x128xf32>
    %c0_13 = arith.constant 0 : index
    %9 = memref.load %arg1[%c0_13] : memref<126xf32, #tpu.memory_space<smem>>
    %10 = vector.broadcast %9 : f32 to vector<10x128xf32>
    %11 = arith.mulf %8, %10 : vector<10x128xf32>
    %12 = vector.extract_strided_slice %7 {offsets = [1, 0], sizes = [10, 128], strides = [1, 1]} : vector<12x128xf32> to vector<10x128xf32>
    %c3 = arith.constant 3 : index
    %13 = memref.load %arg1[%c3] : memref<126xf32, #tpu.memory_space<smem>>
    %14 = vector.broadcast %13 : f32 to vector<10x128xf32>
    %15 = arith.mulf %12, %14 : vector<10x128xf32>
    %16 = arith.addf %11, %15 : vector<10x128xf32>
    %17 = vector.extract_strided_slice %7 {offsets = [2, 0], sizes = [10, 128], strides = [1, 1]} : vector<12x128xf32> to vector<10x128xf32>
    %c6 = arith.constant 6 : index
    %18 = memref.load %arg1[%c6] : memref<126xf32, #tpu.memory_space<smem>>
    %19 = vector.broadcast %18 : f32 to vector<10x128xf32>
    %20 = arith.mulf %17, %19 : vector<10x128xf32>
    %21 = arith.addf %16, %20 : vector<10x128xf32>
    %22 = vector.extract_strided_slice %7 {offsets = [0, 4], sizes = [12, 124], strides = [1, 1]} : vector<12x128xf32> to vector<12x124xf32>
    %23 = vector.extract_strided_slice %7 {offsets = [0, 0], sizes = [12, 4], strides = [1, 1]} : vector<12x128xf32> to vector<12x4xf32>
    %24 = tpu.concatenate %22, %23 in 1 : vector<12x124xf32>, vector<12x4xf32> -> vector<12x128xf32>
    %25 = vector.extract_strided_slice %24 {offsets = [0, 0], sizes = [10, 128], strides = [1, 1]} : vector<12x128xf32> to vector<10x128xf32>
    %c1 = arith.constant 1 : index
    %26 = memref.load %arg1[%c1] : memref<126xf32, #tpu.memory_space<smem>>
    %27 = vector.broadcast %26 : f32 to vector<10x128xf32>
    %28 = arith.mulf %25, %27 : vector<10x128xf32>
    %29 = arith.addf %21, %28 : vector<10x128xf32>
    %30 = vector.extract_strided_slice %24 {offsets = [1, 0], sizes = [10, 128], strides = [1, 1]} : vector<12x128xf32> to vector<10x128xf32>
    %c4 = arith.constant 4 : index
    %31 = memref.load %arg1[%c4] : memref<126xf32, #tpu.memory_space<smem>>
    %32 = vector.broadcast %31 : f32 to vector<10x128xf32>
    %33 = arith.mulf %30, %32 : vector<10x128xf32>
    %34 = arith.addf %29, %33 : vector<10x128xf32>
    %35 = vector.extract_strided_slice %24 {offsets = [2, 0], sizes = [10, 128], strides = [1, 1]} : vector<12x128xf32> to vector<10x128xf32>
    %c7 = arith.constant 7 : index
    %36 = memref.load %arg1[%c7] : memref<126xf32, #tpu.memory_space<smem>>
    %37 = vector.broadcast %36 : f32 to vector<10x128xf32>
    %38 = arith.mulf %35, %37 : vector<10x128xf32>
    %39 = arith.addf %34, %38 : vector<10x128xf32>
    %40 = vector.extract_strided_slice %7 {offsets = [0, 8], sizes = [12, 120], strides = [1, 1]} : vector<12x128xf32> to vector<12x120xf32>
    %41 = vector.extract_strided_slice %7 {offsets = [0, 0], sizes = [12, 8], strides = [1, 1]} : vector<12x128xf32> to vector<12x8xf32>
    %42 = tpu.concatenate %40, %41 in 1 : vector<12x120xf32>, vector<12x8xf32> -> vector<12x128xf32>
    %43 = vector.extract_strided_slice %42 {offsets = [0, 0], sizes = [10, 128], strides = [1, 1]} : vector<12x128xf32> to vector<10x128xf32>
    %c2 = arith.constant 2 : index
    %44 = memref.load %arg1[%c2] : memref<126xf32, #tpu.memory_space<smem>>
    %45 = vector.broadcast %44 : f32 to vector<10x128xf32>
    %46 = arith.mulf %43, %45 : vector<10x128xf32>
    %47 = arith.addf %39, %46 : vector<10x128xf32>
    %48 = vector.extract_strided_slice %42 {offsets = [1, 0], sizes = [10, 128], strides = [1, 1]} : vector<12x128xf32> to vector<10x128xf32>
    %c5 = arith.constant 5 : index
    %49 = memref.load %arg1[%c5] : memref<126xf32, #tpu.memory_space<smem>>
    %50 = vector.broadcast %49 : f32 to vector<10x128xf32>
    %51 = arith.mulf %48, %50 : vector<10x128xf32>
    %52 = arith.addf %47, %51 : vector<10x128xf32>
    %53 = vector.extract_strided_slice %42 {offsets = [2, 0], sizes = [10, 128], strides = [1, 1]} : vector<12x128xf32> to vector<10x128xf32>
    %c8 = arith.constant 8 : index
    %54 = memref.load %arg1[%c8] : memref<126xf32, #tpu.memory_space<smem>>
    %55 = vector.broadcast %54 : f32 to vector<10x128xf32>
    %56 = arith.mulf %53, %55 : vector<10x128xf32>
    %57 = arith.addf %52, %56 : vector<10x128xf32>
    %c1_14 = arith.constant 1 : index
    %c0_15 = arith.constant 0 : index
    %c0_16 = arith.constant 0 : index
    %58 = vector.load %arg0[%c1_14, %c0_15, %c0_16] : memref<5x12x128xf32, #tpu.memory_space<vmem>>, vector<1x12x128xf32>
    %59 = vector.shape_cast %58 : vector<1x12x128xf32> to vector<12x128xf32>
    %60 = vector.extract_strided_slice %59 {offsets = [0, 0], sizes = [10, 128], strides = [1, 1]} : vector<12x128xf32> to vector<10x128xf32>
    %c9 = arith.constant 9 : index
    %61 = memref.load %arg1[%c9] : memref<126xf32, #tpu.memory_space<smem>>
    %62 = vector.broadcast %61 : f32 to vector<10x128xf32>
    %63 = arith.mulf %60, %62 : vector<10x128xf32>
    %64 = arith.addf %57, %63 : vector<10x128xf32>
    %65 = vector.extract_strided_slice %59 {offsets = [1, 0], sizes = [10, 128], strides = [1, 1]} : vector<12x128xf32> to vector<10x128xf32>
    %c12_17 = arith.constant 12 : index
    %66 = memref.load %arg1[%c12_17] : memref<126xf32, #tpu.memory_space<smem>>
    %67 = vector.broadcast %66 : f32 to vector<10x128xf32>
    %68 = arith.mulf %65, %67 : vector<10x128xf32>
    %69 = arith.addf %64, %68 : vector<10x128xf32>
    %70 = vector.extract_strided_slice %59 {offsets = [2, 0], sizes = [10, 128], strides = [1, 1]} : vector<12x128xf32> to vector<10x128xf32>
    %c15 = arith.constant 15 : index
    %71 = memref.load %arg1[%c15] : memref<126xf32, #tpu.memory_space<smem>>
    %72 = vector.broadcast %71 : f32 to vector<10x128xf32>
    %73 = arith.mulf %70, %72 : vector<10x128xf32>
    %74 = arith.addf %69, %73 : vector<10x128xf32>
    %75 = vector.extract_strided_slice %59 {offsets = [0, 4], sizes = [12, 124], strides = [1, 1]} : vector<12x128xf32> to vector<12x124xf32>
    %76 = vector.extract_strided_slice %59 {offsets = [0, 0], sizes = [12, 4], strides = [1, 1]} : vector<12x128xf32> to vector<12x4xf32>
    %77 = tpu.concatenate %75, %76 in 1 : vector<12x124xf32>, vector<12x4xf32> -> vector<12x128xf32>
    %78 = vector.extract_strided_slice %77 {offsets = [0, 0], sizes = [10, 128], strides = [1, 1]} : vector<12x128xf32> to vector<10x128xf32>
    %c10_18 = arith.constant 10 : index
    %79 = memref.load %arg1[%c10_18] : memref<126xf32, #tpu.memory_space<smem>>
    %80 = vector.broadcast %79 : f32 to vector<10x128xf32>
    %81 = arith.mulf %78, %80 : vector<10x128xf32>
    %82 = arith.addf %74, %81 : vector<10x128xf32>
    %83 = vector.extract_strided_slice %77 {offsets = [1, 0], sizes = [10, 128], strides = [1, 1]} : vector<12x128xf32> to vector<10x128xf32>
    %c13 = arith.constant 13 : index
    %84 = memref.load %arg1[%c13] : memref<126xf32, #tpu.memory_space<smem>>
    %85 = vector.broadcast %84 : f32 to vector<10x128xf32>
    %86 = arith.mulf %83, %85 : vector<10x128xf32>
    %87 = arith.addf %82, %86 : vector<10x128xf32>
    %88 = vector.extract_strided_slice %77 {offsets = [2, 0], sizes = [10, 128], strides = [1, 1]} : vector<12x128xf32> to vector<10x128xf32>
    %c16 = arith.constant 16 : index
    %89 = memref.load %arg1[%c16] : memref<126xf32, #tpu.memory_space<smem>>
    %90 = vector.broadcast %89 : f32 to vector<10x128xf32>
    %91 = arith.mulf %88, %90 : vector<10x128xf32>
    %92 = arith.addf %87, %91 : vector<10x128xf32>
    %93 = vector.extract_strided_slice %59 {offsets = [0, 8], sizes = [12, 120], strides = [1, 1]} : vector<12x128xf32> to vector<12x120xf32>
    %94 = vector.extract_strided_slice %59 {offsets = [0, 0], sizes = [12, 8], strides = [1, 1]} : vector<12x128xf32> to vector<12x8xf32>
    %95 = tpu.concatenate %93, %94 in 1 : vector<12x120xf32>, vector<12x8xf32> -> vector<12x128xf32>
    %96 = vector.extract_strided_slice %95 {offsets = [0, 0], sizes = [10, 128], strides = [1, 1]} : vector<12x128xf32> to vector<10x128xf32>
    %c11 = arith.constant 11 : index
    %97 = memref.load %arg1[%c11] : memref<126xf32, #tpu.memory_space<smem>>
    %98 = vector.broadcast %97 : f32 to vector<10x128xf32>
    %99 = arith.mulf %96, %98 : vector<10x128xf32>
    %100 = arith.addf %92, %99 : vector<10x128xf32>
    %101 = vector.extract_strided_slice %95 {offsets = [1, 0], sizes = [10, 128], strides = [1, 1]} : vector<12x128xf32> to vector<10x128xf32>
    %c14 = arith.constant 14 : index
    %102 = memref.load %arg1[%c14] : memref<126xf32, #tpu.memory_space<smem>>
    %103 = vector.broadcast %102 : f32 to vector<10x128xf32>
    %104 = arith.mulf %101, %103 : vector<10x128xf32>
    %105 = arith.addf %100, %104 : vector<10x128xf32>
    %106 = vector.extract_strided_slice %95 {offsets = [2, 0], sizes = [10, 128], strides = [1, 1]} : vector<12x128xf32> to vector<10x128xf32>
    %c17 = arith.constant 17 : index
    %107 = memref.load %arg1[%c17] : memref<126xf32, #tpu.memory_space<smem>>
    %108 = vector.broadcast %107 : f32 to vector<10x128xf32>
    %109 = arith.mulf %106, %108 : vector<10x128xf32>
    %110 = arith.addf %105, %109 : vector<10x128xf32>
    %c2_19 = arith.constant 2 : index
    %c0_20 = arith.constant 0 : index
    %c0_21 = arith.constant 0 : index
    %111 = vector.load %arg0[%c2_19, %c0_20, %c0_21] : memref<5x12x128xf32, #tpu.memory_space<vmem>>, vector<1x12x128xf32>
    %112 = vector.shape_cast %111 : vector<1x12x128xf32> to vector<12x128xf32>
    %113 = vector.extract_strided_slice %112 {offsets = [0, 0], sizes = [10, 128], strides = [1, 1]} : vector<12x128xf32> to vector<10x128xf32>
    %c18 = arith.constant 18 : index
    %114 = memref.load %arg1[%c18] : memref<126xf32, #tpu.memory_space<smem>>
    %115 = vector.broadcast %114 : f32 to vector<10x128xf32>
    %116 = arith.mulf %113, %115 : vector<10x128xf32>
    %117 = arith.addf %110, %116 : vector<10x128xf32>
    %118 = vector.extract_strided_slice %112 {offsets = [1, 0], sizes = [10, 128], strides = [1, 1]} : vector<12x128xf32> to vector<10x128xf32>
    %c21 = arith.constant 21 : index
    %119 = memref.load %arg1[%c21] : memref<126xf32, #tpu.memory_space<smem>>
    %120 = vector.broadcast %119 : f32 to vector<10x128xf32>
    %121 = arith.mulf %118, %120 : vector<10x128xf32>
    %122 = arith.addf %117, %121 : vector<10x128xf32>
    %123 = vector.extract_strided_slice %112 {offsets = [2, 0], sizes = [10, 128], strides = [1, 1]} : vector<12x128xf32> to vector<10x128xf32>
    %c24 = arith.constant 24 : index
    %124 = memref.load %arg1[%c24] : memref<126xf32, #tpu.memory_space<smem>>
    %125 = vector.broadcast %124 : f32 to vector<10x128xf32>
    %126 = arith.mulf %123, %125 : vector<10x128xf32>
    %127 = arith.addf %122, %126 : vector<10x128xf32>
    %128 = vector.extract_strided_slice %112 {offsets = [0, 4], sizes = [12, 124], strides = [1, 1]} : vector<12x128xf32> to vector<12x124xf32>
    %129 = vector.extract_strided_slice %112 {offsets = [0, 0], sizes = [12, 4], strides = [1, 1]} : vector<12x128xf32> to vector<12x4xf32>
    %130 = tpu.concatenate %128, %129 in 1 : vector<12x124xf32>, vector<12x4xf32> -> vector<12x128xf32>
    %131 = vector.extract_strided_slice %130 {offsets = [0, 0], sizes = [10, 128], strides = [1, 1]} : vector<12x128xf32> to vector<10x128xf32>
    %c19 = arith.constant 19 : index
    %132 = memref.load %arg1[%c19] : memref<126xf32, #tpu.memory_space<smem>>
    %133 = vector.broadcast %132 : f32 to vector<10x128xf32>
    %134 = arith.mulf %131, %133 : vector<10x128xf32>
    %135 = arith.addf %127, %134 : vector<10x128xf32>
    %136 = vector.extract_strided_slice %130 {offsets = [1, 0], sizes = [10, 128], strides = [1, 1]} : vector<12x128xf32> to vector<10x128xf32>
    %c22 = arith.constant 22 : index
    %137 = memref.load %arg1[%c22] : memref<126xf32, #tpu.memory_space<smem>>
    %138 = vector.broadcast %137 : f32 to vector<10x128xf32>
    %139 = arith.mulf %136, %138 : vector<10x128xf32>
    %140 = arith.addf %135, %139 : vector<10x128xf32>
    %141 = vector.extract_strided_slice %130 {offsets = [2, 0], sizes = [10, 128], strides = [1, 1]} : vector<12x128xf32> to vector<10x128xf32>
    %c25 = arith.constant 25 : index
    %142 = memref.load %arg1[%c25] : memref<126xf32, #tpu.memory_space<smem>>
    %143 = vector.broadcast %142 : f32 to vector<10x128xf32>
    %144 = arith.mulf %141, %143 : vector<10x128xf32>
    %145 = arith.addf %140, %144 : vector<10x128xf32>
    %146 = vector.extract_strided_slice %112 {offsets = [0, 8], sizes = [12, 120], strides = [1, 1]} : vector<12x128xf32> to vector<12x120xf32>
    %147 = vector.extract_strided_slice %112 {offsets = [0, 0], sizes = [12, 8], strides = [1, 1]} : vector<12x128xf32> to vector<12x8xf32>
    %148 = tpu.concatenate %146, %147 in 1 : vector<12x120xf32>, vector<12x8xf32> -> vector<12x128xf32>
    %149 = vector.extract_strided_slice %148 {offsets = [0, 0], sizes = [10, 128], strides = [1, 1]} : vector<12x128xf32> to vector<10x128xf32>
    %c20 = arith.constant 20 : index
    %150 = memref.load %arg1[%c20] : memref<126xf32, #tpu.memory_space<smem>>
    %151 = vector.broadcast %150 : f32 to vector<10x128xf32>
    %152 = arith.mulf %149, %151 : vector<10x128xf32>
    %153 = arith.addf %145, %152 : vector<10x128xf32>
    %154 = vector.extract_strided_slice %148 {offsets = [1, 0], sizes = [10, 128], strides = [1, 1]} : vector<12x128xf32> to vector<10x128xf32>
    %c23 = arith.constant 23 : index
    %155 = memref.load %arg1[%c23] : memref<126xf32, #tpu.memory_space<smem>>
    %156 = vector.broadcast %155 : f32 to vector<10x128xf32>
    %157 = arith.mulf %154, %156 : vector<10x128xf32>
    %158 = arith.addf %153, %157 : vector<10x128xf32>
    %159 = vector.extract_strided_slice %148 {offsets = [2, 0], sizes = [10, 128], strides = [1, 1]} : vector<12x128xf32> to vector<10x128xf32>
    %c26 = arith.constant 26 : index
    %160 = memref.load %arg1[%c26] : memref<126xf32, #tpu.memory_space<smem>>
    %161 = vector.broadcast %160 : f32 to vector<10x128xf32>
    %162 = arith.mulf %159, %161 : vector<10x128xf32>
    %163 = arith.addf %158, %162 : vector<10x128xf32>
    %c3_22 = arith.constant 3 : index
    %c0_23 = arith.constant 0 : index
    %c0_24 = arith.constant 0 : index
    %164 = vector.load %arg0[%c3_22, %c0_23, %c0_24] : memref<5x12x128xf32, #tpu.memory_space<vmem>>, vector<1x12x128xf32>
    %165 = vector.shape_cast %164 : vector<1x12x128xf32> to vector<12x128xf32>
    %166 = vector.extract_strided_slice %165 {offsets = [0, 0], sizes = [10, 128], strides = [1, 1]} : vector<12x128xf32> to vector<10x128xf32>
    %c27 = arith.constant 27 : index
    %167 = memref.load %arg1[%c27] : memref<126xf32, #tpu.memory_space<smem>>
    %168 = vector.broadcast %167 : f32 to vector<10x128xf32>
    %169 = arith.mulf %166, %168 : vector<10x128xf32>
    %170 = arith.addf %163, %169 : vector<10x128xf32>
    %171 = vector.extract_strided_slice %165 {offsets = [1, 0], sizes = [10, 128], strides = [1, 1]} : vector<12x128xf32> to vector<10x128xf32>
    %c30 = arith.constant 30 : index
    %172 = memref.load %arg1[%c30] : memref<126xf32, #tpu.memory_space<smem>>
    %173 = vector.broadcast %172 : f32 to vector<10x128xf32>
    %174 = arith.mulf %171, %173 : vector<10x128xf32>
    %175 = arith.addf %170, %174 : vector<10x128xf32>
    %176 = vector.extract_strided_slice %165 {offsets = [2, 0], sizes = [10, 128], strides = [1, 1]} : vector<12x128xf32> to vector<10x128xf32>
    %c33 = arith.constant 33 : index
    %177 = memref.load %arg1[%c33] : memref<126xf32, #tpu.memory_space<smem>>
    %178 = vector.broadcast %177 : f32 to vector<10x128xf32>
    %179 = arith.mulf %176, %178 : vector<10x128xf32>
    %180 = arith.addf %175, %179 : vector<10x128xf32>
    %181 = vector.extract_strided_slice %165 {offsets = [0, 4], sizes = [12, 124], strides = [1, 1]} : vector<12x128xf32> to vector<12x124xf32>
    %182 = vector.extract_strided_slice %165 {offsets = [0, 0], sizes = [12, 4], strides = [1, 1]} : vector<12x128xf32> to vector<12x4xf32>
    %183 = tpu.concatenate %181, %182 in 1 : vector<12x124xf32>, vector<12x4xf32> -> vector<12x128xf32>
    %184 = vector.extract_strided_slice %183 {offsets = [0, 0], sizes = [10, 128], strides = [1, 1]} : vector<12x128xf32> to vector<10x128xf32>
    %c28 = arith.constant 28 : index
    %185 = memref.load %arg1[%c28] : memref<126xf32, #tpu.memory_space<smem>>
    %186 = vector.broadcast %185 : f32 to vector<10x128xf32>
    %187 = arith.mulf %184, %186 : vector<10x128xf32>
    %188 = arith.addf %180, %187 : vector<10x128xf32>
    %189 = vector.extract_strided_slice %183 {offsets = [1, 0], sizes = [10, 128], strides = [1, 1]} : vector<12x128xf32> to vector<10x128xf32>
    %c31 = arith.constant 31 : index
    %190 = memref.load %arg1[%c31] : memref<126xf32, #tpu.memory_space<smem>>
    %191 = vector.broadcast %190 : f32 to vector<10x128xf32>
    %192 = arith.mulf %189, %191 : vector<10x128xf32>
    %193 = arith.addf %188, %192 : vector<10x128xf32>
    %194 = vector.extract_strided_slice %183 {offsets = [2, 0], sizes = [10, 128], strides = [1, 1]} : vector<12x128xf32> to vector<10x128xf32>
    %c34 = arith.constant 34 : index
    %195 = memref.load %arg1[%c34] : memref<126xf32, #tpu.memory_space<smem>>
    %196 = vector.broadcast %195 : f32 to vector<10x128xf32>
    %197 = arith.mulf %194, %196 : vector<10x128xf32>
    %198 = arith.addf %193, %197 : vector<10x128xf32>
    %199 = vector.extract_strided_slice %165 {offsets = [0, 8], sizes = [12, 120], strides = [1, 1]} : vector<12x128xf32> to vector<12x120xf32>
    %200 = vector.extract_strided_slice %165 {offsets = [0, 0], sizes = [12, 8], strides = [1, 1]} : vector<12x128xf32> to vector<12x8xf32>
    %201 = tpu.concatenate %199, %200 in 1 : vector<12x120xf32>, vector<12x8xf32> -> vector<12x128xf32>
    %202 = vector.extract_strided_slice %201 {offsets = [0, 0], sizes = [10, 128], strides = [1, 1]} : vector<12x128xf32> to vector<10x128xf32>
    %c29 = arith.constant 29 : index
    %203 = memref.load %arg1[%c29] : memref<126xf32, #tpu.memory_space<smem>>
    %204 = vector.broadcast %203 : f32 to vector<10x128xf32>
    %205 = arith.mulf %202, %204 : vector<10x128xf32>
    %206 = arith.addf %198, %205 : vector<10x128xf32>
    %207 = vector.extract_strided_slice %201 {offsets = [1, 0], sizes = [10, 128], strides = [1, 1]} : vector<12x128xf32> to vector<10x128xf32>
    %c32 = arith.constant 32 : index
    %208 = memref.load %arg1[%c32] : memref<126xf32, #tpu.memory_space<smem>>
    %209 = vector.broadcast %208 : f32 to vector<10x128xf32>
    %210 = arith.mulf %207, %209 : vector<10x128xf32>
    %211 = arith.addf %206, %210 : vector<10x128xf32>
    %212 = vector.extract_strided_slice %201 {offsets = [2, 0], sizes = [10, 128], strides = [1, 1]} : vector<12x128xf32> to vector<10x128xf32>
    %c35 = arith.constant 35 : index
    %213 = memref.load %arg1[%c35] : memref<126xf32, #tpu.memory_space<smem>>
    %214 = vector.broadcast %213 : f32 to vector<10x128xf32>
    %215 = arith.mulf %212, %214 : vector<10x128xf32>
    %216 = arith.addf %211, %215 : vector<10x128xf32>
    %c4_25 = arith.constant 4 : index
    %c0_26 = arith.constant 0 : index
    %c0_27 = arith.constant 0 : index
    %217 = vector.load %arg0[%c4_25, %c0_26, %c0_27] : memref<5x12x128xf32, #tpu.memory_space<vmem>>, vector<1x12x128xf32>
    %218 = vector.shape_cast %217 : vector<1x12x128xf32> to vector<12x128xf32>
    %219 = vector.extract_strided_slice %218 {offsets = [0, 0], sizes = [10, 128], strides = [1, 1]} : vector<12x128xf32> to vector<10x128xf32>
    %c36 = arith.constant 36 : index
    %220 = memref.load %arg1[%c36] : memref<126xf32, #tpu.memory_space<smem>>
    %221 = vector.broadcast %220 : f32 to vector<10x128xf32>
    %222 = arith.mulf %219, %221 : vector<10x128xf32>
    %223 = arith.addf %216, %222 : vector<10x128xf32>
    %224 = vector.extract_strided_slice %218 {offsets = [1, 0], sizes = [10, 128], strides = [1, 1]} : vector<12x128xf32> to vector<10x128xf32>
    %c39 = arith.constant 39 : index
    %225 = memref.load %arg1[%c39] : memref<126xf32, #tpu.memory_space<smem>>
    %226 = vector.broadcast %225 : f32 to vector<10x128xf32>
    %227 = arith.mulf %224, %226 : vector<10x128xf32>
    %228 = arith.addf %223, %227 : vector<10x128xf32>
    %229 = vector.extract_strided_slice %218 {offsets = [2, 0], sizes = [10, 128], strides = [1, 1]} : vector<12x128xf32> to vector<10x128xf32>
    %c42 = arith.constant 42 : index
    %230 = memref.load %arg1[%c42] : memref<126xf32, #tpu.memory_space<smem>>
    %231 = vector.broadcast %230 : f32 to vector<10x128xf32>
    %232 = arith.mulf %229, %231 : vector<10x128xf32>
    %233 = arith.addf %228, %232 : vector<10x128xf32>
    %234 = vector.extract_strided_slice %218 {offsets = [0, 4], sizes = [12, 124], strides = [1, 1]} : vector<12x128xf32> to vector<12x124xf32>
    %235 = vector.extract_strided_slice %218 {offsets = [0, 0], sizes = [12, 4], strides = [1, 1]} : vector<12x128xf32> to vector<12x4xf32>
    %236 = tpu.concatenate %234, %235 in 1 : vector<12x124xf32>, vector<12x4xf32> -> vector<12x128xf32>
    %237 = vector.extract_strided_slice %236 {offsets = [0, 0], sizes = [10, 128], strides = [1, 1]} : vector<12x128xf32> to vector<10x128xf32>
    %c37 = arith.constant 37 : index
    %238 = memref.load %arg1[%c37] : memref<126xf32, #tpu.memory_space<smem>>
    %239 = vector.broadcast %238 : f32 to vector<10x128xf32>
    %240 = arith.mulf %237, %239 : vector<10x128xf32>
    %241 = arith.addf %233, %240 : vector<10x128xf32>
    %242 = vector.extract_strided_slice %236 {offsets = [1, 0], sizes = [10, 128], strides = [1, 1]} : vector<12x128xf32> to vector<10x128xf32>
    %c40 = arith.constant 40 : index
    %243 = memref.load %arg1[%c40] : memref<126xf32, #tpu.memory_space<smem>>
    %244 = vector.broadcast %243 : f32 to vector<10x128xf32>
    %245 = arith.mulf %242, %244 : vector<10x128xf32>
    %246 = arith.addf %241, %245 : vector<10x128xf32>
    %247 = vector.extract_strided_slice %236 {offsets = [2, 0], sizes = [10, 128], strides = [1, 1]} : vector<12x128xf32> to vector<10x128xf32>
    %c43 = arith.constant 43 : index
    %248 = memref.load %arg1[%c43] : memref<126xf32, #tpu.memory_space<smem>>
    %249 = vector.broadcast %248 : f32 to vector<10x128xf32>
    %250 = arith.mulf %247, %249 : vector<10x128xf32>
    %251 = arith.addf %246, %250 : vector<10x128xf32>
    %252 = vector.extract_strided_slice %218 {offsets = [0, 8], sizes = [12, 120], strides = [1, 1]} : vector<12x128xf32> to vector<12x120xf32>
    %253 = vector.extract_strided_slice %218 {offsets = [0, 0], sizes = [12, 8], strides = [1, 1]} : vector<12x128xf32> to vector<12x8xf32>
    %254 = tpu.concatenate %252, %253 in 1 : vector<12x120xf32>, vector<12x8xf32> -> vector<12x128xf32>
    %255 = vector.extract_strided_slice %254 {offsets = [0, 0], sizes = [10, 128], strides = [1, 1]} : vector<12x128xf32> to vector<10x128xf32>
    %c38 = arith.constant 38 : index
    %256 = memref.load %arg1[%c38] : memref<126xf32, #tpu.memory_space<smem>>
    %257 = vector.broadcast %256 : f32 to vector<10x128xf32>
    %258 = arith.mulf %255, %257 : vector<10x128xf32>
    %259 = arith.addf %251, %258 : vector<10x128xf32>
    %260 = vector.extract_strided_slice %254 {offsets = [1, 0], sizes = [10, 128], strides = [1, 1]} : vector<12x128xf32> to vector<10x128xf32>
    %c41 = arith.constant 41 : index
    %261 = memref.load %arg1[%c41] : memref<126xf32, #tpu.memory_space<smem>>
    %262 = vector.broadcast %261 : f32 to vector<10x128xf32>
    %263 = arith.mulf %260, %262 : vector<10x128xf32>
    %264 = arith.addf %259, %263 : vector<10x128xf32>
    %265 = vector.extract_strided_slice %254 {offsets = [2, 0], sizes = [10, 128], strides = [1, 1]} : vector<12x128xf32> to vector<10x128xf32>
    %c44 = arith.constant 44 : index
    %266 = memref.load %arg1[%c44] : memref<126xf32, #tpu.memory_space<smem>>
    %267 = vector.broadcast %266 : f32 to vector<10x128xf32>
    %268 = arith.mulf %265, %267 : vector<10x128xf32>
    %269 = arith.addf %264, %268 : vector<10x128xf32>
    %c0_28 = arith.constant 0 : index
    %270 = memref.load %arg2[%c0_28] : memref<9xf32, #tpu.memory_space<smem>>
    %271 = vector.broadcast %270 : f32 to vector<10x128xf32>
    %272 = arith.addf %269, %271 : vector<10x128xf32>
    %cst_29 = arith.constant 5.000000e-01 : f32
    %273 = vector.broadcast %cst_29 : f32 to vector<10x128xf32>
    %274 = arith.mulf %273, %272 : vector<10x128xf32>
    %275 = math.tanh %274 : vector<10x128xf32>
    %cst_30 = arith.constant 1.000000e+00 : f32
    %276 = vector.broadcast %cst_30 : f32 to vector<10x128xf32>
    %277 = arith.addf %275, %276 : vector<10x128xf32>
    %cst_31 = arith.constant 5.000000e-01 : f32
    %278 = vector.broadcast %cst_31 : f32 to vector<10x128xf32>
    %279 = arith.mulf %278, %277 : vector<10x128xf32>
    %c0_32 = arith.constant 0 : index
    %c0_33 = arith.constant 0 : index
    %c0_34 = arith.constant 0 : index
    %280 = vector.load %arg4[%c0_32, %c0_33, %c0_34] : memref<1x10x128xf32, #tpu.memory_space<vmem>>, vector<1x10x128xf32>
    %281 = vector.shape_cast %280 : vector<1x10x128xf32> to vector<10x128xf32>
    %282 = vector.shape_cast %279 : vector<10x128xf32> to vector<1x10x128xf32>
    tpu.vector_store %arg4[%c0_32, %c0_33, %c0_34], %282 {strides = array<i32>} : memref<1x10x128xf32, #tpu.memory_space<vmem>>, vector<1x10x128xf32>,
    %c0_35 = arith.constant 0 : index
    %c0_36 = arith.constant 0 : index
    %c0_37 = arith.constant 0 : index
    %283 = vector.load %arg4[%c0_35, %c0_36, %c0_37] : memref<1x10x128xf32, #tpu.memory_space<vmem>>, vector<1x10x128xf32>
    %284 = vector.shape_cast %283 : vector<1x10x128xf32> to vector<10x128xf32>
    %285 = vector.extract_strided_slice %284 {offsets = [0, 120], sizes = [10, 8], strides = [1, 1]} : vector<10x128xf32> to vector<10x8xf32>
    %286 = vector.extract_strided_slice %284 {offsets = [0, 0], sizes = [10, 120], strides = [1, 1]} : vector<10x128xf32> to vector<10x120xf32>
    %287 = tpu.concatenate %285, %286 in 1 : vector<10x8xf32>, vector<10x120xf32> -> vector<10x128xf32>
    %288 = vector.extract_strided_slice %287 {offsets = [0, 0], sizes = [8, 128], strides = [1, 1]} : vector<10x128xf32> to vector<8x128xf32>
    %c45 = arith.constant 45 : index
    %289 = memref.load %arg1[%c45] : memref<126xf32, #tpu.memory_space<smem>>
    %290 = vector.broadcast %289 : f32 to vector<8x128xf32>
    %291 = arith.mulf %288, %290 : vector<8x128xf32>
    %c54 = arith.constant 54 : index
    %292 = memref.load %arg1[%c54] : memref<126xf32, #tpu.memory_space<smem>>
    %293 = vector.broadcast %292 : f32 to vector<8x128xf32>
    %294 = arith.mulf %288, %293 : vector<8x128xf32>
    %295 = vector.extract_strided_slice %287 {offsets = [1, 0], sizes = [8, 128], strides = [1, 1]} : vector<10x128xf32> to vector<8x128xf32>
    %c48 = arith.constant 48 : index
    %296 = memref.load %arg1[%c48] : memref<126xf32, #tpu.memory_space<smem>>
    %297 = vector.broadcast %296 : f32 to vector<8x128xf32>
    %298 = arith.mulf %295, %297 : vector<8x128xf32>
    %299 = arith.addf %291, %298 : vector<8x128xf32>
    %c57 = arith.constant 57 : index
    %300 = memref.load %arg1[%c57] : memref<126xf32, #tpu.memory_space<smem>>
    %301 = vector.broadcast %300 : f32 to vector<8x128xf32>
    %302 = arith.mulf %295, %301 : vector<8x128xf32>
    %303 = arith.addf %294, %302 : vector<8x128xf32>
    %304 = vector.extract_strided_slice %287 {offsets = [2, 0], sizes = [8, 128], strides = [1, 1]} : vector<10x128xf32> to vector<8x128xf32>
    %c51 = arith.constant 51 : index
    %305 = memref.load %arg1[%c51] : memref<126xf32, #tpu.memory_space<smem>>
    %306 = vector.broadcast %305 : f32 to vector<8x128xf32>
    %307 = arith.mulf %304, %306 : vector<8x128xf32>
    %308 = arith.addf %299, %307 : vector<8x128xf32>
    %c60 = arith.constant 60 : index
    %309 = memref.load %arg1[%c60] : memref<126xf32, #tpu.memory_space<smem>>
    %310 = vector.broadcast %309 : f32 to vector<8x128xf32>
    %311 = arith.mulf %304, %310 : vector<8x128xf32>
    %312 = arith.addf %303, %311 : vector<8x128xf32>
    %313 = vector.extract_strided_slice %284 {offsets = [0, 124], sizes = [10, 4], strides = [1, 1]} : vector<10x128xf32> to vector<10x4xf32>
    %314 = vector.extract_strided_slice %284 {offsets = [0, 0], sizes = [10, 124], strides = [1, 1]} : vector<10x128xf32> to vector<10x124xf32>
    %315 = tpu.concatenate %313, %314 in 1 : vector<10x4xf32>, vector<10x124xf32> -> vector<10x128xf32>
    %316 = vector.extract_strided_slice %315 {offsets = [0, 0], sizes = [8, 128], strides = [1, 1]} : vector<10x128xf32> to vector<8x128xf32>
    %c46 = arith.constant 46 : index
    %317 = memref.load %arg1[%c46] : memref<126xf32, #tpu.memory_space<smem>>
    %318 = vector.broadcast %317 : f32 to vector<8x128xf32>
    %319 = arith.mulf %316, %318 : vector<8x128xf32>
    %320 = arith.addf %308, %319 : vector<8x128xf32>
    %c55 = arith.constant 55 : index
    %321 = memref.load %arg1[%c55] : memref<126xf32, #tpu.memory_space<smem>>
    %322 = vector.broadcast %321 : f32 to vector<8x128xf32>
    %323 = arith.mulf %316, %322 : vector<8x128xf32>
    %324 = arith.addf %312, %323 : vector<8x128xf32>
    %325 = vector.extract_strided_slice %315 {offsets = [1, 0], sizes = [8, 128], strides = [1, 1]} : vector<10x128xf32> to vector<8x128xf32>
    %c49 = arith.constant 49 : index
    %326 = memref.load %arg1[%c49] : memref<126xf32, #tpu.memory_space<smem>>
    %327 = vector.broadcast %326 : f32 to vector<8x128xf32>
    %328 = arith.mulf %325, %327 : vector<8x128xf32>
    %329 = arith.addf %320, %328 : vector<8x128xf32>
    %c58 = arith.constant 58 : index
    %330 = memref.load %arg1[%c58] : memref<126xf32, #tpu.memory_space<smem>>
    %331 = vector.broadcast %330 : f32 to vector<8x128xf32>
    %332 = arith.mulf %325, %331 : vector<8x128xf32>
    %333 = arith.addf %324, %332 : vector<8x128xf32>
    %334 = vector.extract_strided_slice %315 {offsets = [2, 0], sizes = [8, 128], strides = [1, 1]} : vector<10x128xf32> to vector<8x128xf32>
    %c52 = arith.constant 52 : index
    %335 = memref.load %arg1[%c52] : memref<126xf32, #tpu.memory_space<smem>>
    %336 = vector.broadcast %335 : f32 to vector<8x128xf32>
    %337 = arith.mulf %334, %336 : vector<8x128xf32>
    %338 = arith.addf %329, %337 : vector<8x128xf32>
    %c61 = arith.constant 61 : index
    %339 = memref.load %arg1[%c61] : memref<126xf32, #tpu.memory_space<smem>>
    %340 = vector.broadcast %339 : f32 to vector<8x128xf32>
    %341 = arith.mulf %334, %340 : vector<8x128xf32>
    %342 = arith.addf %333, %341 : vector<8x128xf32>
    %343 = vector.extract_strided_slice %284 {offsets = [0, 0], sizes = [8, 128], strides = [1, 1]} : vector<10x128xf32> to vector<8x128xf32>
    %c47 = arith.constant 47 : index
    %344 = memref.load %arg1[%c47] : memref<126xf32, #tpu.memory_space<smem>>
    %345 = vector.broadcast %344 : f32 to vector<8x128xf32>
    %346 = arith.mulf %343, %345 : vector<8x128xf32>
    %347 = arith.addf %338, %346 : vector<8x128xf32>
    %c56 = arith.constant 56 : index
    %348 = memref.load %arg1[%c56] : memref<126xf32, #tpu.memory_space<smem>>
    %349 = vector.broadcast %348 : f32 to vector<8x128xf32>
    %350 = arith.mulf %343, %349 : vector<8x128xf32>
    %351 = arith.addf %342, %350 : vector<8x128xf32>
    %352 = vector.extract_strided_slice %284 {offsets = [1, 0], sizes = [8, 128], strides = [1, 1]} : vector<10x128xf32> to vector<8x128xf32>
    %c50 = arith.constant 50 : index
    %353 = memref.load %arg1[%c50] : memref<126xf32, #tpu.memory_space<smem>>
    %354 = vector.broadcast %353 : f32 to vector<8x128xf32>
    %355 = arith.mulf %352, %354 : vector<8x128xf32>
    %356 = arith.addf %347, %355 : vector<8x128xf32>
    %c59 = arith.constant 59 : index
    %357 = memref.load %arg1[%c59] : memref<126xf32, #tpu.memory_space<smem>>
    %358 = vector.broadcast %357 : f32 to vector<8x128xf32>
    %359 = arith.mulf %352, %358 : vector<8x128xf32>
    %360 = arith.addf %351, %359 : vector<8x128xf32>
    %361 = vector.extract_strided_slice %284 {offsets = [2, 0], sizes = [8, 128], strides = [1, 1]} : vector<10x128xf32> to vector<8x128xf32>
    %c53 = arith.constant 53 : index
    %362 = memref.load %arg1[%c53] : memref<126xf32, #tpu.memory_space<smem>>
    %363 = vector.broadcast %362 : f32 to vector<8x128xf32>
    %364 = arith.mulf %361, %363 : vector<8x128xf32>
    %365 = arith.addf %356, %364 : vector<8x128xf32>
    %c62 = arith.constant 62 : index
    %366 = memref.load %arg1[%c62] : memref<126xf32, #tpu.memory_space<smem>>
    %367 = vector.broadcast %366 : f32 to vector<8x128xf32>
    %368 = arith.mulf %361, %367 : vector<8x128xf32>
    %369 = arith.addf %360, %368 : vector<8x128xf32>
    %370 = tpu.iota {dimensions = array<i32: 1>} : vector<8x128xi32>
    %c8_i32 = arith.constant 8 : i32
    %371 = vector.broadcast %c8_i32 : i32 to vector<8x128xi32>
    %372 = arith.cmpi sge, %370, %371 : vector<8x128xi32>
    %c40_i32 = arith.constant 40 : i32
    %373 = vector.broadcast %c40_i32 : i32 to vector<8x128xi32>
    %374 = arith.cmpi slt, %370, %373 : vector<8x128xi32>
    %375 = arith.andi %372, %374 : vector<8x128xi1>
    %c72_i32 = arith.constant 72 : i32
    %376 = vector.broadcast %c72_i32 : i32 to vector<8x128xi32>
    %377 = arith.cmpi sge, %370, %376 : vector<8x128xi32>
    %c104_i32 = arith.constant 104 : i32
    %378 = vector.broadcast %c104_i32 : i32 to vector<8x128xi32>
    %379 = arith.cmpi slt, %370, %378 : vector<8x128xi32>
    %380 = arith.andi %377, %379 : vector<8x128xi1>
    %381 = arith.ori %375, %380 : vector<8x128xi1>
    %cst_38 = arith.constant 1.000000e+00 : f32
    %cst_39 = arith.constant 0.000000e+00 : f32
    %382 = vector.broadcast %cst_38 : f32 to vector<8x128xf32>
    %383 = vector.broadcast %cst_39 : f32 to vector<8x128xf32>
    %384 = arith.select %381, %382, %383 : vector<8x128xi1>, vector<8x128xf32>
    %c1_40 = arith.constant 1 : index
    %385 = memref.load %arg2[%c1_40] : memref<9xf32, #tpu.memory_space<smem>>
    %386 = vector.broadcast %385 : f32 to vector<8x128xf32>
    %387 = arith.addf %365, %386 : vector<8x128xf32>
    %cst_41 = arith.constant 5.000000e-01 : f32
    %388 = vector.broadcast %cst_41 : f32 to vector<8x128xf32>
    %389 = arith.mulf %388, %387 : vector<8x128xf32>
    %390 = math.tanh %389 : vector<8x128xf32>
    %cst_42 = arith.constant 1.000000e+00 : f32
    %391 = vector.broadcast %cst_42 : f32 to vector<8x128xf32>
    %392 = arith.addf %390, %391 : vector<8x128xf32>
    %cst_43 = arith.constant 5.000000e-01 : f32
    %393 = vector.broadcast %cst_43 : f32 to vector<8x128xf32>
    %394 = arith.mulf %393, %392 : vector<8x128xf32>
    %395 = arith.mulf %394, %384 : vector<8x128xf32>
    %c0_44 = arith.constant 0 : index
    %c2_45 = arith.constant 2 : index
    %c0_46 = arith.constant 0 : index
    %396 = vector.load %arg5[%c0_44, %c2_45, %c0_46] : memref<2x12x128xf32, #tpu.memory_space<vmem>>, vector<1x8x128xf32>
    %397 = vector.shape_cast %396 : vector<1x8x128xf32> to vector<8x128xf32>
    %398 = vector.shape_cast %395 : vector<8x128xf32> to vector<1x8x128xf32>
    tpu.vector_store %arg5[%c0_44, %c2_45, %c0_46], %398 {strides = array<i32>} : memref<2x12x128xf32, #tpu.memory_space<vmem>>, vector<1x8x128xf32>,
    %c2_47 = arith.constant 2 : index
    %399 = memref.load %arg2[%c2_47] : memref<9xf32, #tpu.memory_space<smem>>
    %400 = vector.broadcast %399 : f32 to vector<8x128xf32>
    %401 = arith.addf %369, %400 : vector<8x128xf32>
    %cst_48 = arith.constant 5.000000e-01 : f32
    %402 = vector.broadcast %cst_48 : f32 to vector<8x128xf32>
    %403 = arith.mulf %402, %401 : vector<8x128xf32>
    %404 = math.tanh %403 : vector<8x128xf32>
    %cst_49 = arith.constant 1.000000e+00 : f32
    %405 = vector.broadcast %cst_49 : f32 to vector<8x128xf32>
    %406 = arith.addf %404, %405 : vector<8x128xf32>
    %cst_50 = arith.constant 5.000000e-01 : f32
    %407 = vector.broadcast %cst_50 : f32 to vector<8x128xf32>
    %408 = arith.mulf %407, %406 : vector<8x128xf32>
    %409 = arith.mulf %408, %384 : vector<8x128xf32>
    %c1_51 = arith.constant 1 : index
    %c2_52 = arith.constant 2 : index
    %c0_53 = arith.constant 0 : index
    %410 = vector.load %arg5[%c1_51, %c2_52, %c0_53] : memref<2x12x128xf32, #tpu.memory_space<vmem>>, vector<1x8x128xf32>
    %411 = vector.shape_cast %410 : vector<1x8x128xf32> to vector<8x128xf32>
    %412 = vector.shape_cast %409 : vector<8x128xf32> to vector<1x8x128xf32>
    tpu.vector_store %arg5[%c1_51, %c2_52, %c0_53], %412 {strides = array<i32>} : memref<2x12x128xf32, #tpu.memory_space<vmem>>, vector<1x8x128xf32>,
    %c0_54 = arith.constant 0 : index
    %c0_55 = arith.constant 0 : index
    %c0_56 = arith.constant 0 : index
    %413 = vector.load %arg5[%c0_54, %c0_55, %c0_56] : memref<2x12x128xf32, #tpu.memory_space<vmem>>, vector<1x12x128xf32>
    %414 = vector.shape_cast %413 : vector<1x12x128xf32> to vector<12x128xf32>
    %415 = vector.extract_strided_slice %414 {offsets = [0, 120], sizes = [12, 8], strides = [1, 1]} : vector<12x128xf32> to vector<12x8xf32>
    %416 = vector.extract_strided_slice %414 {offsets = [0, 0], sizes = [12, 120], strides = [1, 1]} : vector<12x128xf32> to vector<12x120xf32>
    %417 = tpu.concatenate %415, %416 in 1 : vector<12x8xf32>, vector<12x120xf32> -> vector<12x128xf32>
    %418 = vector.extract_strided_slice %417 {offsets = [0, 0], sizes = [10, 128], strides = [1, 1]} : vector<12x128xf32> to vector<10x128xf32>
    %c63 = arith.constant 63 : index
    %419 = memref.load %arg1[%c63] : memref<126xf32, #tpu.memory_space<smem>>
    %420 = vector.broadcast %419 : f32 to vector<10x128xf32>
    %421 = arith.mulf %418, %420 : vector<10x128xf32>
    %422 = vector.extract_strided_slice %417 {offsets = [1, 0], sizes = [10, 128], strides = [1, 1]} : vector<12x128xf32> to vector<10x128xf32>
    %c66 = arith.constant 66 : index
    %423 = memref.load %arg1[%c66] : memref<126xf32, #tpu.memory_space<smem>>
    %424 = vector.broadcast %423 : f32 to vector<10x128xf32>
    %425 = arith.mulf %422, %424 : vector<10x128xf32>
    %426 = arith.addf %421, %425 : vector<10x128xf32>
    %427 = vector.extract_strided_slice %417 {offsets = [2, 0], sizes = [10, 128], strides = [1, 1]} : vector<12x128xf32> to vector<10x128xf32>
    %c69 = arith.constant 69 : index
    %428 = memref.load %arg1[%c69] : memref<126xf32, #tpu.memory_space<smem>>
    %429 = vector.broadcast %428 : f32 to vector<10x128xf32>
    %430 = arith.mulf %427, %429 : vector<10x128xf32>
    %431 = arith.addf %426, %430 : vector<10x128xf32>
    %432 = vector.extract_strided_slice %414 {offsets = [0, 124], sizes = [12, 4], strides = [1, 1]} : vector<12x128xf32> to vector<12x4xf32>
    %433 = vector.extract_strided_slice %414 {offsets = [0, 0], sizes = [12, 124], strides = [1, 1]} : vector<12x128xf32> to vector<12x124xf32>
    %434 = tpu.concatenate %432, %433 in 1 : vector<12x4xf32>, vector<12x124xf32> -> vector<12x128xf32>
    %435 = vector.extract_strided_slice %434 {offsets = [0, 0], sizes = [10, 128], strides = [1, 1]} : vector<12x128xf32> to vector<10x128xf32>
    %c64 = arith.constant 64 : index
    %436 = memref.load %arg1[%c64] : memref<126xf32, #tpu.memory_space<smem>>
    %437 = vector.broadcast %436 : f32 to vector<10x128xf32>
    %438 = arith.mulf %435, %437 : vector<10x128xf32>
    %439 = arith.addf %431, %438 : vector<10x128xf32>
    %440 = vector.extract_strided_slice %434 {offsets = [1, 0], sizes = [10, 128], strides = [1, 1]} : vector<12x128xf32> to vector<10x128xf32>
    %c67 = arith.constant 67 : index
    %441 = memref.load %arg1[%c67] : memref<126xf32, #tpu.memory_space<smem>>
    %442 = vector.broadcast %441 : f32 to vector<10x128xf32>
    %443 = arith.mulf %440, %442 : vector<10x128xf32>
    %444 = arith.addf %439, %443 : vector<10x128xf32>
    %445 = vector.extract_strided_slice %434 {offsets = [2, 0], sizes = [10, 128], strides = [1, 1]} : vector<12x128xf32> to vector<10x128xf32>
    %c70 = arith.constant 70 : index
    %446 = memref.load %arg1[%c70] : memref<126xf32, #tpu.memory_space<smem>>
    %447 = vector.broadcast %446 : f32 to vector<10x128xf32>
    %448 = arith.mulf %445, %447 : vector<10x128xf32>
    %449 = arith.addf %444, %448 : vector<10x128xf32>
    %450 = vector.extract_strided_slice %414 {offsets = [0, 0], sizes = [10, 128], strides = [1, 1]} : vector<12x128xf32> to vector<10x128xf32>
    %c65 = arith.constant 65 : index
    %451 = memref.load %arg1[%c65] : memref<126xf32, #tpu.memory_space<smem>>
    %452 = vector.broadcast %451 : f32 to vector<10x128xf32>
    %453 = arith.mulf %450, %452 : vector<10x128xf32>
    %454 = arith.addf %449, %453 : vector<10x128xf32>
    %455 = vector.extract_strided_slice %414 {offsets = [1, 0], sizes = [10, 128], strides = [1, 1]} : vector<12x128xf32> to vector<10x128xf32>
    %c68 = arith.constant 68 : index
    %456 = memref.load %arg1[%c68] : memref<126xf32, #tpu.memory_space<smem>>
    %457 = vector.broadcast %456 : f32 to vector<10x128xf32>
    %458 = arith.mulf %455, %457 : vector<10x128xf32>
    %459 = arith.addf %454, %458 : vector<10x128xf32>
    %460 = vector.extract_strided_slice %414 {offsets = [2, 0], sizes = [10, 128], strides = [1, 1]} : vector<12x128xf32> to vector<10x128xf32>
    %c71 = arith.constant 71 : index
    %461 = memref.load %arg1[%c71] : memref<126xf32, #tpu.memory_space<smem>>
    %462 = vector.broadcast %461 : f32 to vector<10x128xf32>
    %463 = arith.mulf %460, %462 : vector<10x128xf32>
    %464 = arith.addf %459, %463 : vector<10x128xf32>
    %c1_57 = arith.constant 1 : index
    %c0_58 = arith.constant 0 : index
    %c0_59 = arith.constant 0 : index
    %465 = vector.load %arg5[%c1_57, %c0_58, %c0_59] : memref<2x12x128xf32, #tpu.memory_space<vmem>>, vector<1x12x128xf32>
    %466 = vector.shape_cast %465 : vector<1x12x128xf32> to vector<12x128xf32>
    %467 = vector.extract_strided_slice %466 {offsets = [0, 120], sizes = [12, 8], strides = [1, 1]} : vector<12x128xf32> to vector<12x8xf32>
    %468 = vector.extract_strided_slice %466 {offsets = [0, 0], sizes = [12, 120], strides = [1, 1]} : vector<12x128xf32> to vector<12x120xf32>
    %469 = tpu.concatenate %467, %468 in 1 : vector<12x8xf32>, vector<12x120xf32> -> vector<12x128xf32>
    %470 = vector.extract_strided_slice %469 {offsets = [0, 0], sizes = [10, 128], strides = [1, 1]} : vector<12x128xf32> to vector<10x128xf32>
    %c72 = arith.constant 72 : index
    %471 = memref.load %arg1[%c72] : memref<126xf32, #tpu.memory_space<smem>>
    %472 = vector.broadcast %471 : f32 to vector<10x128xf32>
    %473 = arith.mulf %470, %472 : vector<10x128xf32>
    %474 = arith.addf %464, %473 : vector<10x128xf32>
    %475 = vector.extract_strided_slice %469 {offsets = [1, 0], sizes = [10, 128], strides = [1, 1]} : vector<12x128xf32> to vector<10x128xf32>
    %c75 = arith.constant 75 : index
    %476 = memref.load %arg1[%c75] : memref<126xf32, #tpu.memory_space<smem>>
    %477 = vector.broadcast %476 : f32 to vector<10x128xf32>
    %478 = arith.mulf %475, %477 : vector<10x128xf32>
    %479 = arith.addf %474, %478 : vector<10x128xf32>
    %480 = vector.extract_strided_slice %469 {offsets = [2, 0], sizes = [10, 128], strides = [1, 1]} : vector<12x128xf32> to vector<10x128xf32>
    %c78 = arith.constant 78 : index
    %481 = memref.load %arg1[%c78] : memref<126xf32, #tpu.memory_space<smem>>
    %482 = vector.broadcast %481 : f32 to vector<10x128xf32>
    %483 = arith.mulf %480, %482 : vector<10x128xf32>
    %484 = arith.addf %479, %483 : vector<10x128xf32>
    %485 = vector.extract_strided_slice %466 {offsets = [0, 124], sizes = [12, 4], strides = [1, 1]} : vector<12x128xf32> to vector<12x4xf32>
    %486 = vector.extract_strided_slice %466 {offsets = [0, 0], sizes = [12, 124], strides = [1, 1]} : vector<12x128xf32> to vector<12x124xf32>
    %487 = tpu.concatenate %485, %486 in 1 : vector<12x4xf32>, vector<12x124xf32> -> vector<12x128xf32>
    %488 = vector.extract_strided_slice %487 {offsets = [0, 0], sizes = [10, 128], strides = [1, 1]} : vector<12x128xf32> to vector<10x128xf32>
    %c73 = arith.constant 73 : index
    %489 = memref.load %arg1[%c73] : memref<126xf32, #tpu.memory_space<smem>>
    %490 = vector.broadcast %489 : f32 to vector<10x128xf32>
    %491 = arith.mulf %488, %490 : vector<10x128xf32>
    %492 = arith.addf %484, %491 : vector<10x128xf32>
    %493 = vector.extract_strided_slice %487 {offsets = [1, 0], sizes = [10, 128], strides = [1, 1]} : vector<12x128xf32> to vector<10x128xf32>
    %c76 = arith.constant 76 : index
    %494 = memref.load %arg1[%c76] : memref<126xf32, #tpu.memory_space<smem>>
    %495 = vector.broadcast %494 : f32 to vector<10x128xf32>
    %496 = arith.mulf %493, %495 : vector<10x128xf32>
    %497 = arith.addf %492, %496 : vector<10x128xf32>
    %498 = vector.extract_strided_slice %487 {offsets = [2, 0], sizes = [10, 128], strides = [1, 1]} : vector<12x128xf32> to vector<10x128xf32>
    %c79 = arith.constant 79 : index
    %499 = memref.load %arg1[%c79] : memref<126xf32, #tpu.memory_space<smem>>
    %500 = vector.broadcast %499 : f32 to vector<10x128xf32>
    %501 = arith.mulf %498, %500 : vector<10x128xf32>
    %502 = arith.addf %497, %501 : vector<10x128xf32>
    %503 = vector.extract_strided_slice %466 {offsets = [0, 0], sizes = [10, 128], strides = [1, 1]} : vector<12x128xf32> to vector<10x128xf32>
    %c74 = arith.constant 74 : index
    %504 = memref.load %arg1[%c74] : memref<126xf32, #tpu.memory_space<smem>>
    %505 = vector.broadcast %504 : f32 to vector<10x128xf32>
    %506 = arith.mulf %503, %505 : vector<10x128xf32>
    %507 = arith.addf %502, %506 : vector<10x128xf32>
    %508 = vector.extract_strided_slice %466 {offsets = [1, 0], sizes = [10, 128], strides = [1, 1]} : vector<12x128xf32> to vector<10x128xf32>
    %c77 = arith.constant 77 : index
    %509 = memref.load %arg1[%c77] : memref<126xf32, #tpu.memory_space<smem>>
    %510 = vector.broadcast %509 : f32 to vector<10x128xf32>
    %511 = arith.mulf %508, %510 : vector<10x128xf32>
    %512 = arith.addf %507, %511 : vector<10x128xf32>
    %513 = vector.extract_strided_slice %466 {offsets = [2, 0], sizes = [10, 128], strides = [1, 1]} : vector<12x128xf32> to vector<10x128xf32>
    %c80 = arith.constant 80 : index
    %514 = memref.load %arg1[%c80] : memref<126xf32, #tpu.memory_space<smem>>
    %515 = vector.broadcast %514 : f32 to vector<10x128xf32>
    %516 = arith.mulf %513, %515 : vector<10x128xf32>
    %517 = arith.addf %512, %516 : vector<10x128xf32>
    %518 = tpu.iota {dimensions = array<i32: 1>} : vector<10x128xi32>
    %c8_i32_60 = arith.constant 8 : i32
    %519 = vector.broadcast %c8_i32_60 : i32 to vector<10x128xi32>
    %520 = arith.cmpi sge, %518, %519 : vector<10x128xi32>
    %c48_i32 = arith.constant 48 : i32
    %521 = vector.broadcast %c48_i32 : i32 to vector<10x128xi32>
    %522 = arith.cmpi slt, %518, %521 : vector<10x128xi32>
    %523 = arith.andi %520, %522 : vector<10x128xi1>
    %c72_i32_61 = arith.constant 72 : i32
    %524 = vector.broadcast %c72_i32_61 : i32 to vector<10x128xi32>
    %525 = arith.cmpi sge, %518, %524 : vector<10x128xi32>
    %c112_i32 = arith.constant 112 : i32
    %526 = vector.broadcast %c112_i32 : i32 to vector<10x128xi32>
    %527 = arith.cmpi slt, %518, %526 : vector<10x128xi32>
    %528 = arith.andi %525, %527 : vector<10x128xi1>
    %529 = arith.ori %523, %528 : vector<10x128xi1>
    %cst_62 = arith.constant 1.000000e+00 : f32
    %cst_63 = arith.constant 0.000000e+00 : f32
    %530 = vector.broadcast %cst_62 : f32 to vector<10x128xf32>
    %531 = vector.broadcast %cst_63 : f32 to vector<10x128xf32>
    %532 = arith.select %529, %530, %531 : vector<10x128xi1>, vector<10x128xf32>
    %c3_64 = arith.constant 3 : index
    %533 = memref.load %arg2[%c3_64] : memref<9xf32, #tpu.memory_space<smem>>
    %534 = vector.broadcast %533 : f32 to vector<10x128xf32>
    %535 = arith.addf %517, %534 : vector<10x128xf32>
    %cst_65 = arith.constant 5.000000e-01 : f32
    %536 = vector.broadcast %cst_65 : f32 to vector<10x128xf32>
    %537 = arith.mulf %536, %535 : vector<10x128xf32>
    %538 = math.tanh %537 : vector<10x128xf32>
    %cst_66 = arith.constant 1.000000e+00 : f32
    %539 = vector.broadcast %cst_66 : f32 to vector<10x128xf32>
    %540 = arith.addf %538, %539 : vector<10x128xf32>
    %cst_67 = arith.constant 5.000000e-01 : f32
    %541 = vector.broadcast %cst_67 : f32 to vector<10x128xf32>
    %542 = arith.mulf %541, %540 : vector<10x128xf32>
    %543 = arith.mulf %542, %532 : vector<10x128xf32>
    %c0_68 = arith.constant 0 : index
    %c2_69 = arith.constant 2 : index
    %c0_70 = arith.constant 0 : index
    %544 = vector.load %arg6[%c0_68, %c2_69, %c0_70] : memref<1x14x128xf32, #tpu.memory_space<vmem>>, vector<1x10x128xf32>
    %545 = vector.shape_cast %544 : vector<1x10x128xf32> to vector<10x128xf32>
    %546 = vector.shape_cast %543 : vector<10x128xf32> to vector<1x10x128xf32>
    tpu.vector_store %arg6[%c0_68, %c2_69, %c0_70], %546 {strides = array<i32>} : memref<1x14x128xf32, #tpu.memory_space<vmem>>, vector<1x10x128xf32>,
    %c0_71 = arith.constant 0 : index
    %c0_72 = arith.constant 0 : index
    %c0_73 = arith.constant 0 : index
    %547 = vector.load %arg6[%c0_71, %c0_72, %c0_73] : memref<1x14x128xf32, #tpu.memory_space<vmem>>, vector<1x14x128xf32>
    %548 = vector.shape_cast %547 : vector<1x14x128xf32> to vector<14x128xf32>
    %549 = vector.extract_strided_slice %548 {offsets = [0, 0], sizes = [12, 128], strides = [1, 1]} : vector<14x128xf32> to vector<12x128xf32>
    %c81 = arith.constant 81 : index
    %550 = memref.load %arg1[%c81] : memref<126xf32, #tpu.memory_space<smem>>
    %551 = vector.broadcast %550 : f32 to vector<12x128xf32>
    %552 = arith.mulf %549, %551 : vector<12x128xf32>
    %c90 = arith.constant 90 : index
    %553 = memref.load %arg1[%c90] : memref<126xf32, #tpu.memory_space<smem>>
    %554 = vector.broadcast %553 : f32 to vector<12x128xf32>
    %555 = arith.mulf %549, %554 : vector<12x128xf32>
    %c99 = arith.constant 99 : index
    %556 = memref.load %arg1[%c99] : memref<126xf32, #tpu.memory_space<smem>>
    %557 = vector.broadcast %556 : f32 to vector<12x128xf32>
    %558 = arith.mulf %549, %557 : vector<12x128xf32>
    %c108 = arith.constant 108 : index
    %559 = memref.load %arg1[%c108] : memref<126xf32, #tpu.memory_space<smem>>
    %560 = vector.broadcast %559 : f32 to vector<12x128xf32>
    %561 = arith.mulf %549, %560 : vector<12x128xf32>
    %c117 = arith.constant 117 : index
    %562 = memref.load %arg1[%c117] : memref<126xf32, #tpu.memory_space<smem>>
    %563 = vector.broadcast %562 : f32 to vector<12x128xf32>
    %564 = arith.mulf %549, %563 : vector<12x128xf32>
    %565 = vector.extract_strided_slice %548 {offsets = [1, 0], sizes = [12, 128], strides = [1, 1]} : vector<14x128xf32> to vector<12x128xf32>
    %c84 = arith.constant 84 : index
    %566 = memref.load %arg1[%c84] : memref<126xf32, #tpu.memory_space<smem>>
    %567 = vector.broadcast %566 : f32 to vector<12x128xf32>
    %568 = arith.mulf %565, %567 : vector<12x128xf32>
    %569 = arith.addf %552, %568 : vector<12x128xf32>
    %c93 = arith.constant 93 : index
    %570 = memref.load %arg1[%c93] : memref<126xf32, #tpu.memory_space<smem>>
    %571 = vector.broadcast %570 : f32 to vector<12x128xf32>
    %572 = arith.mulf %565, %571 : vector<12x128xf32>
    %573 = arith.addf %555, %572 : vector<12x128xf32>
    %c102 = arith.constant 102 : index
    %574 = memref.load %arg1[%c102] : memref<126xf32, #tpu.memory_space<smem>>
    %575 = vector.broadcast %574 : f32 to vector<12x128xf32>
    %576 = arith.mulf %565, %575 : vector<12x128xf32>
    %577 = arith.addf %558, %576 : vector<12x128xf32>
    %c111 = arith.constant 111 : index
    %578 = memref.load %arg1[%c111] : memref<126xf32, #tpu.memory_space<smem>>
    %579 = vector.broadcast %578 : f32 to vector<12x128xf32>
    %580 = arith.mulf %565, %579 : vector<12x128xf32>
    %581 = arith.addf %561, %580 : vector<12x128xf32>
    %c120 = arith.constant 120 : index
    %582 = memref.load %arg1[%c120] : memref<126xf32, #tpu.memory_space<smem>>
    %583 = vector.broadcast %582 : f32 to vector<12x128xf32>
    %584 = arith.mulf %565, %583 : vector<12x128xf32>
    %585 = arith.addf %564, %584 : vector<12x128xf32>
    %586 = vector.extract_strided_slice %548 {offsets = [2, 0], sizes = [12, 128], strides = [1, 1]} : vector<14x128xf32> to vector<12x128xf32>
    %c87 = arith.constant 87 : index
    %587 = memref.load %arg1[%c87] : memref<126xf32, #tpu.memory_space<smem>>
    %588 = vector.broadcast %587 : f32 to vector<12x128xf32>
    %589 = arith.mulf %586, %588 : vector<12x128xf32>
    %590 = arith.addf %569, %589 : vector<12x128xf32>
    %c96 = arith.constant 96 : index
    %591 = memref.load %arg1[%c96] : memref<126xf32, #tpu.memory_space<smem>>
    %592 = vector.broadcast %591 : f32 to vector<12x128xf32>
    %593 = arith.mulf %586, %592 : vector<12x128xf32>
    %594 = arith.addf %573, %593 : vector<12x128xf32>
    %c105 = arith.constant 105 : index
    %595 = memref.load %arg1[%c105] : memref<126xf32, #tpu.memory_space<smem>>
    %596 = vector.broadcast %595 : f32 to vector<12x128xf32>
    %597 = arith.mulf %586, %596 : vector<12x128xf32>
    %598 = arith.addf %577, %597 : vector<12x128xf32>
    %c114 = arith.constant 114 : index
    %599 = memref.load %arg1[%c114] : memref<126xf32, #tpu.memory_space<smem>>
    %600 = vector.broadcast %599 : f32 to vector<12x128xf32>
    %601 = arith.mulf %586, %600 : vector<12x128xf32>
    %602 = arith.addf %581, %601 : vector<12x128xf32>
    %c123 = arith.constant 123 : index
    %603 = memref.load %arg1[%c123] : memref<126xf32, #tpu.memory_space<smem>>
    %604 = vector.broadcast %603 : f32 to vector<12x128xf32>
    %605 = arith.mulf %586, %604 : vector<12x128xf32>
    %606 = arith.addf %585, %605 : vector<12x128xf32>
    %607 = vector.extract_strided_slice %548 {offsets = [0, 4], sizes = [14, 124], strides = [1, 1]} : vector<14x128xf32> to vector<14x124xf32>
    %608 = vector.extract_strided_slice %548 {offsets = [0, 0], sizes = [14, 4], strides = [1, 1]} : vector<14x128xf32> to vector<14x4xf32>
    %609 = tpu.concatenate %607, %608 in 1 : vector<14x124xf32>, vector<14x4xf32> -> vector<14x128xf32>
    %610 = vector.extract_strided_slice %609 {offsets = [0, 0], sizes = [12, 128], strides = [1, 1]} : vector<14x128xf32> to vector<12x128xf32>
    %c82 = arith.constant 82 : index
    %611 = memref.load %arg1[%c82] : memref<126xf32, #tpu.memory_space<smem>>
    %612 = vector.broadcast %611 : f32 to vector<12x128xf32>
    %613 = arith.mulf %610, %612 : vector<12x128xf32>
    %614 = arith.addf %590, %613 : vector<12x128xf32>
    %c91 = arith.constant 91 : index
    %615 = memref.load %arg1[%c91] : memref<126xf32, #tpu.memory_space<smem>>
    %616 = vector.broadcast %615 : f32 to vector<12x128xf32>
    %617 = arith.mulf %610, %616 : vector<12x128xf32>
    %618 = arith.addf %594, %617 : vector<12x128xf32>
    %c100 = arith.constant 100 : index
    %619 = memref.load %arg1[%c100] : memref<126xf32, #tpu.memory_space<smem>>
    %620 = vector.broadcast %619 : f32 to vector<12x128xf32>
    %621 = arith.mulf %610, %620 : vector<12x128xf32>
    %622 = arith.addf %598, %621 : vector<12x128xf32>
    %c109 = arith.constant 109 : index
    %623 = memref.load %arg1[%c109] : memref<126xf32, #tpu.memory_space<smem>>
    %624 = vector.broadcast %623 : f32 to vector<12x128xf32>
    %625 = arith.mulf %610, %624 : vector<12x128xf32>
    %626 = arith.addf %602, %625 : vector<12x128xf32>
    %c118 = arith.constant 118 : index
    %627 = memref.load %arg1[%c118] : memref<126xf32, #tpu.memory_space<smem>>
    %628 = vector.broadcast %627 : f32 to vector<12x128xf32>
    %629 = arith.mulf %610, %628 : vector<12x128xf32>
    %630 = arith.addf %606, %629 : vector<12x128xf32>
    %631 = vector.extract_strided_slice %609 {offsets = [1, 0], sizes = [12, 128], strides = [1, 1]} : vector<14x128xf32> to vector<12x128xf32>
    %c85 = arith.constant 85 : index
    %632 = memref.load %arg1[%c85] : memref<126xf32, #tpu.memory_space<smem>>
    %633 = vector.broadcast %632 : f32 to vector<12x128xf32>
    %634 = arith.mulf %631, %633 : vector<12x128xf32>
    %635 = arith.addf %614, %634 : vector<12x128xf32>
    %c94 = arith.constant 94 : index
    %636 = memref.load %arg1[%c94] : memref<126xf32, #tpu.memory_space<smem>>
    %637 = vector.broadcast %636 : f32 to vector<12x128xf32>
    %638 = arith.mulf %631, %637 : vector<12x128xf32>
    %639 = arith.addf %618, %638 : vector<12x128xf32>
    %c103 = arith.constant 103 : index
    %640 = memref.load %arg1[%c103] : memref<126xf32, #tpu.memory_space<smem>>
    %641 = vector.broadcast %640 : f32 to vector<12x128xf32>
    %642 = arith.mulf %631, %641 : vector<12x128xf32>
    %643 = arith.addf %622, %642 : vector<12x128xf32>
    %c112 = arith.constant 112 : index
    %644 = memref.load %arg1[%c112] : memref<126xf32, #tpu.memory_space<smem>>
    %645 = vector.broadcast %644 : f32 to vector<12x128xf32>
    %646 = arith.mulf %631, %645 : vector<12x128xf32>
    %647 = arith.addf %626, %646 : vector<12x128xf32>
    %c121 = arith.constant 121 : index
    %648 = memref.load %arg1[%c121] : memref<126xf32, #tpu.memory_space<smem>>
    %649 = vector.broadcast %648 : f32 to vector<12x128xf32>
    %650 = arith.mulf %631, %649 : vector<12x128xf32>
    %651 = arith.addf %630, %650 : vector<12x128xf32>
    %652 = vector.extract_strided_slice %609 {offsets = [2, 0], sizes = [12, 128], strides = [1, 1]} : vector<14x128xf32> to vector<12x128xf32>
    %c88 = arith.constant 88 : index
    %653 = memref.load %arg1[%c88] : memref<126xf32, #tpu.memory_space<smem>>
    %654 = vector.broadcast %653 : f32 to vector<12x128xf32>
    %655 = arith.mulf %652, %654 : vector<12x128xf32>
    %656 = arith.addf %635, %655 : vector<12x128xf32>
    %c97 = arith.constant 97 : index
    %657 = memref.load %arg1[%c97] : memref<126xf32, #tpu.memory_space<smem>>
    %658 = vector.broadcast %657 : f32 to vector<12x128xf32>
    %659 = arith.mulf %652, %658 : vector<12x128xf32>
    %660 = arith.addf %639, %659 : vector<12x128xf32>
    %c106 = arith.constant 106 : index
    %661 = memref.load %arg1[%c106] : memref<126xf32, #tpu.memory_space<smem>>
    %662 = vector.broadcast %661 : f32 to vector<12x128xf32>
    %663 = arith.mulf %652, %662 : vector<12x128xf32>
    %664 = arith.addf %643, %663 : vector<12x128xf32>
    %c115 = arith.constant 115 : index
    %665 = memref.load %arg1[%c115] : memref<126xf32, #tpu.memory_space<smem>>
    %666 = vector.broadcast %665 : f32 to vector<12x128xf32>
    %667 = arith.mulf %652, %666 : vector<12x128xf32>
    %668 = arith.addf %647, %667 : vector<12x128xf32>
    %c124 = arith.constant 124 : index
    %669 = memref.load %arg1[%c124] : memref<126xf32, #tpu.memory_space<smem>>
    %670 = vector.broadcast %669 : f32 to vector<12x128xf32>
    %671 = arith.mulf %652, %670 : vector<12x128xf32>
    %672 = arith.addf %651, %671 : vector<12x128xf32>
    %673 = vector.extract_strided_slice %548 {offsets = [0, 8], sizes = [14, 120], strides = [1, 1]} : vector<14x128xf32> to vector<14x120xf32>
    %674 = vector.extract_strided_slice %548 {offsets = [0, 0], sizes = [14, 8], strides = [1, 1]} : vector<14x128xf32> to vector<14x8xf32>
    %675 = tpu.concatenate %673, %674 in 1 : vector<14x120xf32>, vector<14x8xf32> -> vector<14x128xf32>
    %676 = vector.extract_strided_slice %675 {offsets = [0, 0], sizes = [12, 128], strides = [1, 1]} : vector<14x128xf32> to vector<12x128xf32>
    %c83 = arith.constant 83 : index
    %677 = memref.load %arg1[%c83] : memref<126xf32, #tpu.memory_space<smem>>
    %678 = vector.broadcast %677 : f32 to vector<12x128xf32>
    %679 = arith.mulf %676, %678 : vector<12x128xf32>
    %680 = arith.addf %656, %679 : vector<12x128xf32>
    %c92 = arith.constant 92 : index
    %681 = memref.load %arg1[%c92] : memref<126xf32, #tpu.memory_space<smem>>
    %682 = vector.broadcast %681 : f32 to vector<12x128xf32>
    %683 = arith.mulf %676, %682 : vector<12x128xf32>
    %684 = arith.addf %660, %683 : vector<12x128xf32>
    %c101 = arith.constant 101 : index
    %685 = memref.load %arg1[%c101] : memref<126xf32, #tpu.memory_space<smem>>
    %686 = vector.broadcast %685 : f32 to vector<12x128xf32>
    %687 = arith.mulf %676, %686 : vector<12x128xf32>
    %688 = arith.addf %664, %687 : vector<12x128xf32>
    %c110 = arith.constant 110 : index
    %689 = memref.load %arg1[%c110] : memref<126xf32, #tpu.memory_space<smem>>
    %690 = vector.broadcast %689 : f32 to vector<12x128xf32>
    %691 = arith.mulf %676, %690 : vector<12x128xf32>
    %692 = arith.addf %668, %691 : vector<12x128xf32>
    %c119 = arith.constant 119 : index
    %693 = memref.load %arg1[%c119] : memref<126xf32, #tpu.memory_space<smem>>
    %694 = vector.broadcast %693 : f32 to vector<12x128xf32>
    %695 = arith.mulf %676, %694 : vector<12x128xf32>
    %696 = arith.addf %672, %695 : vector<12x128xf32>
    %697 = vector.extract_strided_slice %675 {offsets = [1, 0], sizes = [12, 128], strides = [1, 1]} : vector<14x128xf32> to vector<12x128xf32>
    %c86 = arith.constant 86 : index
    %698 = memref.load %arg1[%c86] : memref<126xf32, #tpu.memory_space<smem>>
    %699 = vector.broadcast %698 : f32 to vector<12x128xf32>
    %700 = arith.mulf %697, %699 : vector<12x128xf32>
    %701 = arith.addf %680, %700 : vector<12x128xf32>
    %c95 = arith.constant 95 : index
    %702 = memref.load %arg1[%c95] : memref<126xf32, #tpu.memory_space<smem>>
    %703 = vector.broadcast %702 : f32 to vector<12x128xf32>
    %704 = arith.mulf %697, %703 : vector<12x128xf32>
    %705 = arith.addf %684, %704 : vector<12x128xf32>
    %c104 = arith.constant 104 : index
    %706 = memref.load %arg1[%c104] : memref<126xf32, #tpu.memory_space<smem>>
    %707 = vector.broadcast %706 : f32 to vector<12x128xf32>
    %708 = arith.mulf %697, %707 : vector<12x128xf32>
    %709 = arith.addf %688, %708 : vector<12x128xf32>
    %c113 = arith.constant 113 : index
    %710 = memref.load %arg1[%c113] : memref<126xf32, #tpu.memory_space<smem>>
    %711 = vector.broadcast %710 : f32 to vector<12x128xf32>
    %712 = arith.mulf %697, %711 : vector<12x128xf32>
    %713 = arith.addf %692, %712 : vector<12x128xf32>
    %c122 = arith.constant 122 : index
    %714 = memref.load %arg1[%c122] : memref<126xf32, #tpu.memory_space<smem>>
    %715 = vector.broadcast %714 : f32 to vector<12x128xf32>
    %716 = arith.mulf %697, %715 : vector<12x128xf32>
    %717 = arith.addf %696, %716 : vector<12x128xf32>
    %718 = vector.extract_strided_slice %675 {offsets = [2, 0], sizes = [12, 128], strides = [1, 1]} : vector<14x128xf32> to vector<12x128xf32>
    %c89 = arith.constant 89 : index
    %719 = memref.load %arg1[%c89] : memref<126xf32, #tpu.memory_space<smem>>
    %720 = vector.broadcast %719 : f32 to vector<12x128xf32>
    %721 = arith.mulf %718, %720 : vector<12x128xf32>
    %722 = arith.addf %701, %721 : vector<12x128xf32>
    %c98 = arith.constant 98 : index
    %723 = memref.load %arg1[%c98] : memref<126xf32, #tpu.memory_space<smem>>
    %724 = vector.broadcast %723 : f32 to vector<12x128xf32>
    %725 = arith.mulf %718, %724 : vector<12x128xf32>
    %726 = arith.addf %705, %725 : vector<12x128xf32>
    %c107 = arith.constant 107 : index
    %727 = memref.load %arg1[%c107] : memref<126xf32, #tpu.memory_space<smem>>
    %728 = vector.broadcast %727 : f32 to vector<12x128xf32>
    %729 = arith.mulf %718, %728 : vector<12x128xf32>
    %730 = arith.addf %709, %729 : vector<12x128xf32>
    %c116 = arith.constant 116 : index
    %731 = memref.load %arg1[%c116] : memref<126xf32, #tpu.memory_space<smem>>
    %732 = vector.broadcast %731 : f32 to vector<12x128xf32>
    %733 = arith.mulf %718, %732 : vector<12x128xf32>
    %734 = arith.addf %713, %733 : vector<12x128xf32>
    %c125 = arith.constant 125 : index
    %735 = memref.load %arg1[%c125] : memref<126xf32, #tpu.memory_space<smem>>
    %736 = vector.broadcast %735 : f32 to vector<12x128xf32>
    %737 = arith.mulf %718, %736 : vector<12x128xf32>
    %738 = arith.addf %717, %737 : vector<12x128xf32>
    %c4_74 = arith.constant 4 : index
    %739 = memref.load %arg2[%c4_74] : memref<9xf32, #tpu.memory_space<smem>>
    %740 = vector.broadcast %739 : f32 to vector<12x128xf32>
    %741 = arith.addf %722, %740 : vector<12x128xf32>
    %cst_75 = arith.constant 5.000000e-01 : f32
    %742 = vector.broadcast %cst_75 : f32 to vector<12x128xf32>
    %743 = arith.mulf %742, %741 : vector<12x128xf32>
    %744 = math.tanh %743 : vector<12x128xf32>
    %cst_76 = arith.constant 1.000000e+00 : f32
    %745 = vector.broadcast %cst_76 : f32 to vector<12x128xf32>
    %746 = arith.addf %744, %745 : vector<12x128xf32>
    %cst_77 = arith.constant 5.000000e-01 : f32
    %747 = vector.broadcast %cst_77 : f32 to vector<12x128xf32>
    %748 = arith.mulf %747, %746 : vector<12x128xf32>
    %c0_78 = arith.constant 0 : index
    %c0_79 = arith.constant 0 : index
    %c0_80 = arith.constant 0 : index
    %749 = vector.load %arg3[%c0_78, %c0_79, %c0_80] : memref<5x12x128xf32, #tpu.memory_space<vmem>>, vector<1x12x128xf32>
    %750 = vector.shape_cast %749 : vector<1x12x128xf32> to vector<12x128xf32>
    %751 = vector.shape_cast %748 : vector<12x128xf32> to vector<1x12x128xf32>
    tpu.vector_store %arg3[%c0_78, %c0_79, %c0_80], %751 {strides = array<i32>} : memref<5x12x128xf32, #tpu.memory_space<vmem>>, vector<1x12x128xf32>,
    %c5_81 = arith.constant 5 : index
    %752 = memref.load %arg2[%c5_81] : memref<9xf32, #tpu.memory_space<smem>>
    %753 = vector.broadcast %752 : f32 to vector<12x128xf32>
    %754 = arith.addf %726, %753 : vector<12x128xf32>
    %cst_82 = arith.constant 5.000000e-01 : f32
    %755 = vector.broadcast %cst_82 : f32 to vector<12x128xf32>
    %756 = arith.mulf %755, %754 : vector<12x128xf32>
    %757 = math.tanh %756 : vector<12x128xf32>
    %cst_83 = arith.constant 1.000000e+00 : f32
    %758 = vector.broadcast %cst_83 : f32 to vector<12x128xf32>
    %759 = arith.addf %757, %758 : vector<12x128xf32>
    %cst_84 = arith.constant 5.000000e-01 : f32
    %760 = vector.broadcast %cst_84 : f32 to vector<12x128xf32>
    %761 = arith.mulf %760, %759 : vector<12x128xf32>
    %c1_85 = arith.constant 1 : index
    %c0_86 = arith.constant 0 : index
    %c0_87 = arith.constant 0 : index
    %762 = vector.load %arg3[%c1_85, %c0_86, %c0_87] : memref<5x12x128xf32, #tpu.memory_space<vmem>>, vector<1x12x128xf32>
    %763 = vector.shape_cast %762 : vector<1x12x128xf32> to vector<12x128xf32>
    %764 = vector.shape_cast %761 : vector<12x128xf32> to vector<1x12x128xf32>
    tpu.vector_store %arg3[%c1_85, %c0_86, %c0_87], %764 {strides = array<i32>} : memref<5x12x128xf32, #tpu.memory_space<vmem>>, vector<1x12x128xf32>,
    %c6_88 = arith.constant 6 : index
    %765 = memref.load %arg2[%c6_88] : memref<9xf32, #tpu.memory_space<smem>>
    %766 = vector.broadcast %765 : f32 to vector<12x128xf32>
    %767 = arith.addf %730, %766 : vector<12x128xf32>
    %cst_89 = arith.constant 5.000000e-01 : f32
    %768 = vector.broadcast %cst_89 : f32 to vector<12x128xf32>
    %769 = arith.mulf %768, %767 : vector<12x128xf32>
    %770 = math.tanh %769 : vector<12x128xf32>
    %cst_90 = arith.constant 1.000000e+00 : f32
    %771 = vector.broadcast %cst_90 : f32 to vector<12x128xf32>
    %772 = arith.addf %770, %771 : vector<12x128xf32>
    %cst_91 = arith.constant 5.000000e-01 : f32
    %773 = vector.broadcast %cst_91 : f32 to vector<12x128xf32>
    %774 = arith.mulf %773, %772 : vector<12x128xf32>
    %c2_92 = arith.constant 2 : index
    %c0_93 = arith.constant 0 : index
    %c0_94 = arith.constant 0 : index
    %775 = vector.load %arg3[%c2_92, %c0_93, %c0_94] : memref<5x12x128xf32, #tpu.memory_space<vmem>>, vector<1x12x128xf32>
    %776 = vector.shape_cast %775 : vector<1x12x128xf32> to vector<12x128xf32>
    %777 = vector.shape_cast %774 : vector<12x128xf32> to vector<1x12x128xf32>
    tpu.vector_store %arg3[%c2_92, %c0_93, %c0_94], %777 {strides = array<i32>} : memref<5x12x128xf32, #tpu.memory_space<vmem>>, vector<1x12x128xf32>,
    %c7_95 = arith.constant 7 : index
    %778 = memref.load %arg2[%c7_95] : memref<9xf32, #tpu.memory_space<smem>>
    %779 = vector.broadcast %778 : f32 to vector<12x128xf32>
    %780 = arith.addf %734, %779 : vector<12x128xf32>
    %cst_96 = arith.constant 5.000000e-01 : f32
    %781 = vector.broadcast %cst_96 : f32 to vector<12x128xf32>
    %782 = arith.mulf %781, %780 : vector<12x128xf32>
    %783 = math.tanh %782 : vector<12x128xf32>
    %cst_97 = arith.constant 1.000000e+00 : f32
    %784 = vector.broadcast %cst_97 : f32 to vector<12x128xf32>
    %785 = arith.addf %783, %784 : vector<12x128xf32>
    %cst_98 = arith.constant 5.000000e-01 : f32
    %786 = vector.broadcast %cst_98 : f32 to vector<12x128xf32>
    %787 = arith.mulf %786, %785 : vector<12x128xf32>
    %c3_99 = arith.constant 3 : index
    %c0_100 = arith.constant 0 : index
    %c0_101 = arith.constant 0 : index
    %788 = vector.load %arg3[%c3_99, %c0_100, %c0_101] : memref<5x12x128xf32, #tpu.memory_space<vmem>>, vector<1x12x128xf32>
    %789 = vector.shape_cast %788 : vector<1x12x128xf32> to vector<12x128xf32>
    %790 = vector.shape_cast %787 : vector<12x128xf32> to vector<1x12x128xf32>
    tpu.vector_store %arg3[%c3_99, %c0_100, %c0_101], %790 {strides = array<i32>} : memref<5x12x128xf32, #tpu.memory_space<vmem>>, vector<1x12x128xf32>,
    %c8_102 = arith.constant 8 : index
    %791 = memref.load %arg2[%c8_102] : memref<9xf32, #tpu.memory_space<smem>>
    %792 = vector.broadcast %791 : f32 to vector<12x128xf32>
    %793 = arith.addf %738, %792 : vector<12x128xf32>
    %cst_103 = arith.constant 5.000000e-01 : f32
    %794 = vector.broadcast %cst_103 : f32 to vector<12x128xf32>
    %795 = arith.mulf %794, %793 : vector<12x128xf32>
    %796 = math.tanh %795 : vector<12x128xf32>
    %cst_104 = arith.constant 1.000000e+00 : f32
    %797 = vector.broadcast %cst_104 : f32 to vector<12x128xf32>
    %798 = arith.addf %796, %797 : vector<12x128xf32>
    %cst_105 = arith.constant 5.000000e-01 : f32
    %799 = vector.broadcast %cst_105 : f32 to vector<12x128xf32>
    %800 = arith.mulf %799, %798 : vector<12x128xf32>
    %c4_106 = arith.constant 4 : index
    %c0_107 = arith.constant 0 : index
    %c0_108 = arith.constant 0 : index
    %801 = vector.load %arg3[%c4_106, %c0_107, %c0_108] : memref<5x12x128xf32, #tpu.memory_space<vmem>>, vector<1x12x128xf32>
    %802 = vector.shape_cast %801 : vector<1x12x128xf32> to vector<12x128xf32>
    %803 = vector.shape_cast %800 : vector<12x128xf32> to vector<1x12x128xf32>
    tpu.vector_store %arg3[%c4_106, %c0_107, %c0_108], %803 {strides = array<i32>} : memref<5x12x128xf32, #tpu.memory_space<vmem>>, vector<1x12x128xf32>,
    return
  }
}

</mosaic_0001>

<llo_original>
// kernel: fwd.1
$region0: #{fwd.1}
  #allocation0 [shape = 'u32[]', space=smem, size = 0x4, offset = 0x4, fixed_abs, tag = 'smem constant byte address 0x4 - core index']
  #allocation1 [shape = 'u32[144,128]{1,0:T(1,128)}', space=vmem, size = 0x12000, scoped, tag = 'internal scratch']
  #allocation2 [shape = 'f32[1,10,128]{2,1,0:T(8,128)}', space=vmem, size = 0x2000, scoped, tag = 'scratch operand']
  #allocation3 [shape = 'f32[2,12,128]{2,1,0:T(8,128)}', space=vmem, size = 0x4000, scoped, tag = 'scratch operand']
  #allocation4 [shape = 'f32[1,14,128]{2,1,0:T(8,128)}', space=vmem, size = 0x2000, scoped, tag = 'scratch operand']
  %s0 = inlined_call_operand.vmem [shape: f32[5,12,128], index: 0, kind: input, shape index: {}]
  %s1 = inlined_call_operand.vmem [shape: f32[126], index: 1, kind: input, shape index: {}]
  %s2 = inlined_call_operand.vmem [shape: f32[9], index: 2, kind: input, shape index: {}]
  %s3 = inlined_call_operand.vmem [shape: f32[5,12,128], index: 3, kind: output, shape index: {}]
  %s4 = sld [smem:[#allocation0]]
  $region30: #{fwd.1} parent=0
    _
  %s6 = ssub.s32 1, %s4
  %s7 = scalar_select 0, %s6, %s4
  $region1: #{fwd.1} parent=0
    #allocation5 [shape = 'u8[512]{0}', space=smem, size = 0x200, scoped, tag = 'input window, operand 1, single buffered']
    #allocation6 [shape = 's32[1]{0}', space=sflag, size = 0x4, scoped, tag = 'scoped memory for fwd.1']
    #allocation7 [shape = 'u8[512]{0}', space=smem, size = 0x200, scoped, tag = 'input window, operand 2, single buffered']
    #allocation8 [shape = 's32[1]{0}', space=sflag, size = 0x4, scoped, tag = 'scoped memory for fwd.1']
    %8 = vsyncpa [#allocation6], 0
    %9 = vsyncpa [#allocation8], 0
    // Predicated region
    $region2: #{fwd.1} parent=1 // pred_check
      _
    $region3: #{fwd.1} parent=1 // pred_check_branch
      %11 = sbr.rel (0) target = $region5
    $region4: #{fwd.1} parent=1 // pred_region
      _
    $region5: #{fwd.1} parent=1 // pred_fallthru
      _
    // Predicated region
    $region6: #{fwd.1} parent=1 // pred_check
      _
    $region7: #{fwd.1} parent=1 // pred_check_branch
      %13 = sbr.rel (0) target = $region9
    $region8: #{fwd.1} parent=1 // pred_region
      %s15 = ssub.s32 16, 16
      %16 = vsyncadd [#allocation6], %s15
      %s18 = sshll.u32 %s1, 4
      %s19 = int_to_ptr.vmem [resolvable:$true] %s18
      %21 = dma.vmem_to_smem %s19, 16, [#allocation5], [#allocation6]
    $region9: #{fwd.1} parent=1 // pred_fallthru
      _
    // Predicated region
    $region10: #{fwd.1} parent=1 // pred_check
      _
    $region11: #{fwd.1} parent=1 // pred_check_branch
      %23 = sbr.rel (0) target = $region13
    $region12: #{fwd.1} parent=1 // pred_region
      %s25 = ssub.s32 16, 16
      %26 = vsyncadd [#allocation8], %s25
      %s28 = sshll.u32 %s2, 4
      %s29 = int_to_ptr.vmem [resolvable:$true] %s28
      %31 = dma.vmem_to_smem %s29, 16, [#allocation7], [#allocation8]
    $region13: #{fwd.1} parent=1 // pred_fallthru
      _
    // Predicated region
    $region14: #{fwd.1} parent=1 // pred_check
      _
    $region15: #{fwd.1} parent=1 // pred_check_branch
      %33 = sbr.rel (0) target = $region17
    $region16: #{fwd.1} parent=1 // pred_region
      %34 = dma.done [#allocation6], 16
    $region17: #{fwd.1} parent=1 // pred_fallthru
      _
    // Predicated region
    $region18: #{fwd.1} parent=1 // pred_check
      _
    $region19: #{fwd.1} parent=1 // pred_check_branch
      %36 = sbr.rel (0) target = $region21
    $region20: #{fwd.1} parent=1 // pred_region
      %37 = dma.done [#allocation8], 16
    $region21: #{fwd.1} parent=1 // pred_fallthru
      _
    %38 = sfence
    %39 = vst [vmem:[#allocation3] sm:$0x3] 0.0
    %40 = vst [vmem:[#allocation3 + $0x10] sm:$0x3] 0.0
    %41 = vst [vmem:[#allocation3 + $0xa] sm:$0x3] 0.0
    %42 = vst [vmem:[#allocation3 + $0x1a] sm:$0x3] 0.0
    %43 = vst [vmem:[#allocation4] sm:$0x3] 0.0
    %44 = vst [vmem:[#allocation4 + $0xc] sm:$0x3] 0.0
    %v45 = vld [vmem:[%s0] sm:$0xff]
    %v46 = vld [vmem:[%s0 + $0x8] sm:$0xf]
    %s47 = sld [smem:[#allocation5]]
    %v48 = vstv %s47
    %v49 = vmul.f32 %v45, %v48
    %v50 = vmul.f32 %v46, %v48
    %s51 = sld [smem:[#allocation5 + $0x3]]
    %v52 = vstv %s51
    %v53 = vmul.f32 %v45, %v52
    %v54 = vmul.f32 %v46, %v52
    %vm57 = vcmask 1046528
    %v58 = vrot.slane %v53, 1
    %v59 = vrot.slane %v54, 1
    %v60 = vsel %vm57, %v58, %v59
    %v63 = vadd.f32 %v49, %v60
    %v64 = vadd.f32 %v50, %v59
    %s65 = sld [smem:[#allocation5 + $0x6]]
    %v66 = vstv %s65
    %v67 = vmul.f32 %v45, %v66
    %v68 = vmul.f32 %v46, %v66
    %vm71 = vcmask 1045504
    %v72 = vrot.slane %v67, 2
    %v73 = vrot.slane %v68, 2
    %v74 = vsel %vm71, %v72, %v73
    %v77 = vadd.f32 %v63, %v74
    %v78 = vadd.f32 %v64, %v73
    %81 = vrot.lane.b32.xlu0 %v45, 124
    %v82 = vpop.permute.xlu0 %81
    %83 = vrot.lane.b32.xlu0 %v46, 124
    %v84 = vpop.permute.xlu0 %83
    %s87 = sld [smem:[#allocation5 + $0x1]]
    %v88 = vstv %s87
    %v89 = vmul.f32 %v82, %v88
    %v90 = vmul.f32 %v84, %v88
    %v91 = vadd.f32 %v77, %v89
    %v92 = vadd.f32 %v78, %v90
    %s93 = sld [smem:[#allocation5 + $0x4]]
    %v94 = vstv %s93
    %v95 = vmul.f32 %v82, %v94
    %v96 = vmul.f32 %v84, %v94
    %v99 = vrot.slane %v95, 1
    %v100 = vrot.slane %v96, 1
    %v101 = vsel %vm57, %v99, %v100
    %v104 = vadd.f32 %v91, %v101
    %v105 = vadd.f32 %v92, %v100
    %s106 = sld [smem:[#allocation5 + $0x7]]
    %v107 = vstv %s106
    %v108 = vmul.f32 %v82, %v107
    %v109 = vmul.f32 %v84, %v107
    %v112 = vrot.slane %v108, 2
    %v113 = vrot.slane %v109, 2
    %v114 = vsel %vm71, %v112, %v113
    %v117 = vadd.f32 %v104, %v114
    %v118 = vadd.f32 %v105, %v113
    %119 = vrot.lane.b32.xlu0 %v45, 120
    %v120 = vpop.permute.xlu0 %119
    %121 = vrot.lane.b32.xlu0 %v46, 120
    %v122 = vpop.permute.xlu0 %121
    %s125 = sld [smem:[#allocation5 + $0x2]]
    %v126 = vstv %s125
    %v127 = vmul.f32 %v120, %v126
    %v128 = vmul.f32 %v122, %v126
    %v129 = vadd.f32 %v117, %v127
    %v130 = vadd.f32 %v118, %v128
    %s131 = sld [smem:[#allocation5 + $0x5]]
    %v132 = vstv %s131
    %v133 = vmul.f32 %v120, %v132
    %v134 = vmul.f32 %v122, %v132
    %v137 = vrot.slane %v133, 1
    %v138 = vrot.slane %v134, 1
    %v139 = vsel %vm57, %v137, %v138
    %v142 = vadd.f32 %v129, %v139
    %v143 = vadd.f32 %v130, %v138
    %s144 = sld [smem:[#allocation5 + $0x8]]
    %v145 = vstv %s144
    %v146 = vmul.f32 %v120, %v145
    %v147 = vmul.f32 %v122, %v145
    %v150 = vrot.slane %v146, 2
    %v151 = vrot.slane %v147, 2
    %v152 = vsel %vm71, %v150, %v151
    %v155 = vadd.f32 %v142, %v152
    %v156 = vadd.f32 %v143, %v151
    %s157 = scalar_lea.vmem %s0, 16
    %v158 = vld [vmem:[%s157] sm:$0xff]
    %v159 = vld [vmem:[%s157 + $0x8] sm:$0xf]
    %s160 = sld [smem:[#allocation5 + $0x9]]
    %v161 = vstv %s160
    %v162 = vmul.f32 %v158, %v161
    %v163 = vmul.f32 %v159, %v161
    %v164 = vadd.f32 %v155, %v162
    %v165 = vadd.f32 %v156, %v163
    %s166 = sld [smem:[#allocation5 + $0xc]]
    %v167 = vstv %s166
    %v168 = vmul.f32 %v158, %v167
    %v169 = vmul.f32 %v159, %v167
    %v172 = vrot.slane %v168, 1
    %v173 = vrot.slane %v169, 1
    %v174 = vsel %vm57, %v172, %v173
    %v177 = vadd.f32 %v164, %v174
    %v178 = vadd.f32 %v165, %v173
    %s179 = sld [smem:[#allocation5 + $0xf]]
    %v180 = vstv %s179
    %v181 = vmul.f32 %v158, %v180
    %v182 = vmul.f32 %v159, %v180
    %v185 = vrot.slane %v181, 2
    %v186 = vrot.slane %v182, 2
    %v187 = vsel %vm71, %v185, %v186
    %v190 = vadd.f32 %v177, %v187
    %v191 = vadd.f32 %v178, %v186
    %194 = vrot.lane.b32.xlu0 %v158, 124
    %v195 = vpop.permute.xlu0 %194
    %196 = vrot.lane.b32.xlu0 %v159, 124
    %v197 = vpop.permute.xlu0 %196
    %s200 = sld [smem:[#allocation5 + $0xa]]
    %v201 = vstv %s200
    %v202 = vmul.f32 %v195, %v201
    %v203 = vmul.f32 %v197, %v201
    %v204 = vadd.f32 %v190, %v202
    %v205 = vadd.f32 %v191, %v203
    %s206 = sld [smem:[#allocation5 + $0xd]]
    %v207 = vstv %s206
    %v208 = vmul.f32 %v195, %v207
    %v209 = vmul.f32 %v197, %v207
    %v212 = vrot.slane %v208, 1
    %v213 = vrot.slane %v209, 1
    %v214 = vsel %vm57, %v212, %v213
    %v217 = vadd.f32 %v204, %v214
    %v218 = vadd.f32 %v205, %v213
    %s219 = sld [smem:[#allocation5 + $0x10]]
    %v220 = vstv %s219
    %v221 = vmul.f32 %v195, %v220
    %v222 = vmul.f32 %v197, %v220
    %v225 = vrot.slane %v221, 2
    %v226 = vrot.slane %v222, 2
    %v227 = vsel %vm71, %v225, %v226
    %v230 = vadd.f32 %v217, %v227
    %v231 = vadd.f32 %v218, %v226
    %232 = vrot.lane.b32.xlu0 %v158, 120
    %v233 = vpop.permute.xlu0 %232
    %234 = vrot.lane.b32.xlu0 %v159, 120
    %v235 = vpop.permute.xlu0 %234
    %s238 = sld [smem:[#allocation5 + $0xb]]
    %v239 = vstv %s238
    %v240 = vmul.f32 %v233, %v239
    %v241 = vmul.f32 %v235, %v239
    %v242 = vadd.f32 %v230, %v240
    %v243 = vadd.f32 %v231, %v241
    %s244 = sld [smem:[#allocation5 + $0xe]]
    %v245 = vstv %s244
    %v246 = vmul.f32 %v233, %v245
    %v247 = vmul.f32 %v235, %v245
    %v250 = vrot.slane %v246, 1
    %v251 = vrot.slane %v247, 1
    %v252 = vsel %vm57, %v250, %v251
    %v255 = vadd.f32 %v242, %v252
    %v256 = vadd.f32 %v243, %v251
    %s257 = sld [smem:[#allocation5 + $0x11]]
    %v258 = vstv %s257
    %v259 = vmul.f32 %v233, %v258
    %v260 = vmul.f32 %v235, %v258
    %v263 = vrot.slane %v259, 2
    %v264 = vrot.slane %v260, 2
    %v265 = vsel %vm71, %v263, %v264
    %v268 = vadd.f32 %v255, %v265
    %v269 = vadd.f32 %v256, %v264
    %s270 = scalar_lea.vmem %s0, 32
    %v271 = vld [vmem:[%s270] sm:$0xff]
    %v272 = vld [vmem:[%s270 + $0x8] sm:$0xf]
    %s273 = sld [smem:[#allocation5 + $0x12]]
    %v274 = vstv %s273
    %v275 = vmul.f32 %v271, %v274
    %v276 = vmul.f32 %v272, %v274
    %v277 = vadd.f32 %v268, %v275
    %v278 = vadd.f32 %v269, %v276
    %s279 = sld [smem:[#allocation5 + $0x15]]
    %v280 = vstv %s279
    %v281 = vmul.f32 %v271, %v280
    %v282 = vmul.f32 %v272, %v280
    %v285 = vrot.slane %v281, 1
    %v286 = vrot.slane %v282, 1
    %v287 = vsel %vm57, %v285, %v286
    %v290 = vadd.f32 %v277, %v287
    %v291 = vadd.f32 %v278, %v286
    %s292 = sld [smem:[#allocation5 + $0x18]]
    %v293 = vstv %s292
    %v294 = vmul.f32 %v271, %v293
    %v295 = vmul.f32 %v272, %v293
    %v298 = vrot.slane %v294, 2
    %v299 = vrot.slane %v295, 2
    %v300 = vsel %vm71, %v298, %v299
    %v303 = vadd.f32 %v290, %v300
    %v304 = vadd.f32 %v291, %v299
    %307 = vrot.lane.b32.xlu0 %v271, 124
    %v308 = vpop.permute.xlu0 %307
    %309 = vrot.lane.b32.xlu0 %v272, 124
    %v310 = vpop.permute.xlu0 %309
    %s313 = sld [smem:[#allocation5 + $0x13]]
    %v314 = vstv %s313
    %v315 = vmul.f32 %v308, %v314
    %v316 = vmul.f32 %v310, %v314
    %v317 = vadd.f32 %v303, %v315
    %v318 = vadd.f32 %v304, %v316
    %s319 = sld [smem:[#allocation5 + $0x16]]
    %v320 = vstv %s319
    %v321 = vmul.f32 %v308, %v320
    %v322 = vmul.f32 %v310, %v320
    %v325 = vrot.slane %v321, 1
    %v326 = vrot.slane %v322, 1
    %v327 = vsel %vm57, %v325, %v326
    %v330 = vadd.f32 %v317, %v327
    %v331 = vadd.f32 %v318, %v326
    %s332 = sld [smem:[#allocation5 + $0x19]]
    %v333 = vstv %s332
    %v334 = vmul.f32 %v308, %v333
    %v335 = vmul.f32 %v310, %v333
    %v338 = vrot.slane %v334, 2
    %v339 = vrot.slane %v335, 2
    %v340 = vsel %vm71, %v338, %v339
    %v343 = vadd.f32 %v330, %v340
    %v344 = vadd.f32 %v331, %v339
    %345 = vrot.lane.b32.xlu0 %v271, 120
    %v346 = vpop.permute.xlu0 %345
    %347 = vrot.lane.b32.xlu0 %v272, 120
    %v348 = vpop.permute.xlu0 %347
    %s351 = sld [smem:[#allocation5 + $0x14]]
    %v352 = vstv %s351
    %v353 = vmul.f32 %v346, %v352
    %v354 = vmul.f32 %v348, %v352
    %v355 = vadd.f32 %v343, %v353
    %v356 = vadd.f32 %v344, %v354
    %s357 = sld [smem:[#allocation5 + $0x17]]
    %v358 = vstv %s357
    %v359 = vmul.f32 %v346, %v358
    %v360 = vmul.f32 %v348, %v358
    %v363 = vrot.slane %v359, 1
    %v364 = vrot.slane %v360, 1
    %v365 = vsel %vm57, %v363, %v364
    %v368 = vadd.f32 %v355, %v365
    %v369 = vadd.f32 %v356, %v364
    %s370 = sld [smem:[#allocation5 + $0x1a]]
    %v371 = vstv %s370
    %v372 = vmul.f32 %v346, %v371
    %v373 = vmul.f32 %v348, %v371
    %v376 = vrot.slane %v372, 2
    %v377 = vrot.slane %v373, 2
    %v378 = vsel %vm71, %v376, %v377
    %v381 = vadd.f32 %v368, %v378
    %v382 = vadd.f32 %v369, %v377
    %s383 = scalar_lea.vmem %s0, 48
    %v384 = vld [vmem:[%s383] sm:$0xff]
    %v385 = vld [vmem:[%s383 + $0x8] sm:$0xf]
    %s386 = sld [smem:[#allocation5 + $0x1b]]
    %v387 = vstv %s386
    %v388 = vmul.f32 %v384, %v387
    %v389 = vmul.f32 %v385, %v387
    %v390 = vadd.f32 %v381, %v388
    %v391 = vadd.f32 %v382, %v389
    %s392 = sld [smem:[#allocation5 + $0x1e]]
    %v393 = vstv %s392
    %v394 = vmul.f32 %v384, %v393
    %v395 = vmul.f32 %v385, %v393
    %v398 = vrot.slane %v394, 1
    %v399 = vrot.slane %v395, 1
    %v400 = vsel %vm57, %v398, %v399
    %v403 = vadd.f32 %v390, %v400
    %v404 = vadd.f32 %v391, %v399
    %s405 = sld [smem:[#allocation5 + $0x21]]
    %v406 = vstv %s405
    %v407 = vmul.f32 %v384, %v406
    %v408 = vmul.f32 %v385, %v406
    %v411 = vrot.slane %v407, 2
    %v412 = vrot.slane %v408, 2
    %v413 = vsel %vm71, %v411, %v412
    %v416 = vadd.f32 %v403, %v413
    %v417 = vadd.f32 %v404, %v412
    %420 = vrot.lane.b32.xlu0 %v384, 124
    %v421 = vpop.permute.xlu0 %420
    %422 = vrot.lane.b32.xlu0 %v385, 124
    %v423 = vpop.permute.xlu0 %422
    %s426 = sld [smem:[#allocation5 + $0x1c]]
    %v427 = vstv %s426
    %v428 = vmul.f32 %v421, %v427
    %v429 = vmul.f32 %v423, %v427
    %v430 = vadd.f32 %v416, %v428
    %v431 = vadd.f32 %v417, %v429
    %s432 = sld [smem:[#allocation5 + $0x1f]]
    %v433 = vstv %s432
    %v434 = vmul.f32 %v421, %v433
    %v435 = vmul.f32 %v423, %v433
    %v438 = vrot.slane %v434, 1
    %v439 = vrot.slane %v435, 1
    %v440 = vsel %vm57, %v438, %v439
    %v443 = vadd.f32 %v430, %v440
    %v444 = vadd.f32 %v431, %v439
    %s445 = sld [smem:[#allocation5 + $0x22]]
    %v446 = vstv %s445
    %v447 = vmul.f32 %v421, %v446
    %v448 = vmul.f32 %v423, %v446
    %v451 = vrot.slane %v447, 2
    %v452 = vrot.slane %v448, 2
    %v453 = vsel %vm71, %v451, %v452
    %v456 = vadd.f32 %v443, %v453
    %v457 = vadd.f32 %v444, %v452
    %458 = vrot.lane.b32.xlu0 %v384, 120
    %v459 = vpop.permute.xlu0 %458
    %460 = vrot.lane.b32.xlu0 %v385, 120
    %v461 = vpop.permute.xlu0 %460
    %s464 = sld [smem:[#allocation5 + $0x1d]]
    %v465 = vstv %s464
    %v466 = vmul.f32 %v459, %v465
    %v467 = vmul.f32 %v461, %v465
    %v468 = vadd.f32 %v456, %v466
    %v469 = vadd.f32 %v457, %v467
    %s470 = sld [smem:[#allocation5 + $0x20]]
    %v471 = vstv %s470
    %v472 = vmul.f32 %v459, %v471
    %v473 = vmul.f32 %v461, %v471
    %v476 = vrot.slane %v472, 1
    %v477 = vrot.slane %v473, 1
    %v478 = vsel %vm57, %v476, %v477
    %v481 = vadd.f32 %v468, %v478
    %v482 = vadd.f32 %v469, %v477
    %s483 = sld [smem:[#allocation5 + $0x23]]
    %v484 = vstv %s483
    %v485 = vmul.f32 %v459, %v484
    %v486 = vmul.f32 %v461, %v484
    %v489 = vrot.slane %v485, 2
    %v490 = vrot.slane %v486, 2
    %v491 = vsel %vm71, %v489, %v490
    %v494 = vadd.f32 %v481, %v491
    %v495 = vadd.f32 %v482, %v490
    %s496 = scalar_lea.vmem %s0, 64
    %v497 = vld [vmem:[%s496] sm:$0xff]
    %v498 = vld [vmem:[%s496 + $0x8] sm:$0xf]
    %s499 = sld [smem:[#allocation5 + $0x24]]
    %v500 = vstv %s499
    %v501 = vmul.f32 %v497, %v500
    %v502 = vmul.f32 %v498, %v500
    %v503 = vadd.f32 %v494, %v501
    %v504 = vadd.f32 %v495, %v502
    %s505 = sld [smem:[#allocation5 + $0x27]]
    %v506 = vstv %s505
    %v507 = vmul.f32 %v497, %v506
    %v508 = vmul.f32 %v498, %v506
    %v511 = vrot.slane %v507, 1
    %v512 = vrot.slane %v508, 1
    %v513 = vsel %vm57, %v511, %v512
    %v516 = vadd.f32 %v503, %v513
    %v517 = vadd.f32 %v504, %v512
    %s518 = sld [smem:[#allocation5 + $0x2a]]
    %v519 = vstv %s518
    %v520 = vmul.f32 %v497, %v519
    %v521 = vmul.f32 %v498, %v519
    %v524 = vrot.slane %v520, 2
    %v525 = vrot.slane %v521, 2
    %v526 = vsel %vm71, %v524, %v525
    %v529 = vadd.f32 %v516, %v526
    %v530 = vadd.f32 %v517, %v525
    %533 = vrot.lane.b32.xlu0 %v497, 124
    %v534 = vpop.permute.xlu0 %533
    %535 = vrot.lane.b32.xlu0 %v498, 124
    %v536 = vpop.permute.xlu0 %535
    %s539 = sld [smem:[#allocation5 + $0x25]]
    %v540 = vstv %s539
    %v541 = vmul.f32 %v534, %v540
    %v542 = vmul.f32 %v536, %v540
    %v543 = vadd.f32 %v529, %v541
    %v544 = vadd.f32 %v530, %v542
    %s545 = sld [smem:[#allocation5 + $0x28]]
    %v546 = vstv %s545
    %v547 = vmul.f32 %v534, %v546
    %v548 = vmul.f32 %v536, %v546
    %v551 = vrot.slane %v547, 1
    %v552 = vrot.slane %v548, 1
    %v553 = vsel %vm57, %v551, %v552
    %v556 = vadd.f32 %v543, %v553
    %v557 = vadd.f32 %v544, %v552
    %s558 = sld [smem:[#allocation5 + $0x2b]]
    %v559 = vstv %s558
    %v560 = vmul.f32 %v534, %v559
    %v561 = vmul.f32 %v536, %v559
    %v564 = vrot.slane %v560, 2
    %v565 = vrot.slane %v561, 2
    %v566 = vsel %vm71, %v564, %v565
    %v569 = vadd.f32 %v556, %v566
    %v570 = vadd.f32 %v557, %v565
    %571 = vrot.lane.b32.xlu0 %v497, 120
    %v572 = vpop.permute.xlu0 %571
    %573 = vrot.lane.b32.xlu0 %v498, 120
    %v574 = vpop.permute.xlu0 %573
    %s577 = sld [smem:[#allocation5 + $0x26]]
    %v578 = vstv %s577
    %v579 = vmul.f32 %v572, %v578
    %v580 = vmul.f32 %v574, %v578
    %v581 = vadd.f32 %v569, %v579
    %v582 = vadd.f32 %v570, %v580
    %s583 = sld [smem:[#allocation5 + $0x29]]
    %v584 = vstv %s583
    %v585 = vmul.f32 %v572, %v584
    %v586 = vmul.f32 %v574, %v584
    %v589 = vrot.slane %v585, 1
    %v590 = vrot.slane %v586, 1
    %v591 = vsel %vm57, %v589, %v590
    %v594 = vadd.f32 %v581, %v591
    %v595 = vadd.f32 %v582, %v590
    %s596 = sld [smem:[#allocation5 + $0x2c]]
    %v597 = vstv %s596
    %v598 = vmul.f32 %v572, %v597
    %v599 = vmul.f32 %v574, %v597
    %v602 = vrot.slane %v598, 2
    %v603 = vrot.slane %v599, 2
    %v604 = vsel %vm71, %v602, %v603
    %v607 = vadd.f32 %v594, %v604
    %v608 = vadd.f32 %v595, %v603
    %s609 = sld [smem:[#allocation7]]
    %v610 = vstv %s609
    %v611 = vadd.f32 %v607, %v610
    %v612 = vadd.f32 %v608, %v610
    %v613 = vmul.f32 %v611, 0.5
    %v614 = vmul.f32 %v612, 0.5
    %v615 = vtanh.pop %v613
    %v616 = vtanh.pop %v614
    %v617 = vadd.f32 %v615, 1.0
    %v618 = vadd.f32 %v616, 1.0
    %v619 = vmul.f32 %v617, 0.5
    %v620 = vmul.f32 %v618, 0.5
    %621 = vst [vmem:[#allocation2] sm:$0xff] %v619
    %622 = vst [vmem:[#allocation2 + $0x8] sm:$0x3] %v620
    %v623 = vld [vmem:[#allocation2] sm:$0xff]
    %v624 = vld [vmem:[#allocation2 + $0x8] sm:$0x3]
    %627 = vrot.lane.b32.xlu0 %v623, 8
    %v628 = vpop.permute.xlu0 %627
    %629 = vrot.lane.b32.xlu0 %v624, 8
    %v630 = vpop.permute.xlu0 %629
    %s633 = sld [smem:[#allocation5 + $0x2d]]
    %v634 = vstv %s633
    %v635 = vmul.f32 %v628, %v634
    %s636 = sld [smem:[#allocation5 + $0x36]]
    %v637 = vstv %s636
    %v638 = vmul.f32 %v628, %v637
    %s639 = sld [smem:[#allocation5 + $0x30]]
    %v640 = vstv %s639
    %v641 = vmul.f32 %v628, %v640
    %v642 = vmul.f32 %v630, %v640
    %v645 = vrot.slane %v641, 1
    %v646 = vrot.slane %v642, 1
    %v647 = vsel %vm57, %v645, %v646
    %v649 = vadd.f32 %v635, %v647
    %s650 = sld [smem:[#allocation5 + $0x39]]
    %v651 = vstv %s650
    %v652 = vmul.f32 %v628, %v651
    %v653 = vmul.f32 %v630, %v651
    %v656 = vrot.slane %v652, 1
    %v657 = vrot.slane %v653, 1
    %v658 = vsel %vm57, %v656, %v657
    %v660 = vadd.f32 %v638, %v658
    %s661 = sld [smem:[#allocation5 + $0x33]]
    %v662 = vstv %s661
    %v663 = vmul.f32 %v628, %v662
    %v664 = vmul.f32 %v630, %v662
    %v667 = vrot.slane %v663, 2
    %v668 = vrot.slane %v664, 2
    %v669 = vsel %vm71, %v667, %v668
    %v671 = vadd.f32 %v649, %v669
    %s672 = sld [smem:[#allocation5 + $0x3c]]
    %v673 = vstv %s672
    %v674 = vmul.f32 %v628, %v673
    %v675 = vmul.f32 %v630, %v673
    %v678 = vrot.slane %v674, 2
    %v679 = vrot.slane %v675, 2
    %v680 = vsel %vm71, %v678, %v679
    %v682 = vadd.f32 %v660, %v680
    %683 = vrot.lane.b32.xlu0 %v623, 4
    %v684 = vpop.permute.xlu0 %683
    %685 = vrot.lane.b32.xlu0 %v624, 4
    %v686 = vpop.permute.xlu0 %685
    %s689 = sld [smem:[#allocation5 + $0x2e]]
    %v690 = vstv %s689
    %v691 = vmul.f32 %v684, %v690
    %v692 = vadd.f32 %v671, %v691
    %s693 = sld [smem:[#allocation5 + $0x37]]
    %v694 = vstv %s693
    %v695 = vmul.f32 %v684, %v694
    %v696 = vadd.f32 %v682, %v695
    %s697 = sld [smem:[#allocation5 + $0x31]]
    %v698 = vstv %s697
    %v699 = vmul.f32 %v684, %v698
    %v700 = vmul.f32 %v686, %v698
    %v703 = vrot.slane %v699, 1
    %v704 = vrot.slane %v700, 1
    %v705 = vsel %vm57, %v703, %v704
    %v707 = vadd.f32 %v692, %v705
    %s708 = sld [smem:[#allocation5 + $0x3a]]
    %v709 = vstv %s708
    %v710 = vmul.f32 %v684, %v709
    %v711 = vmul.f32 %v686, %v709
    %v714 = vrot.slane %v710, 1
    %v715 = vrot.slane %v711, 1
    %v716 = vsel %vm57, %v714, %v715
    %v718 = vadd.f32 %v696, %v716
    %s719 = sld [smem:[#allocation5 + $0x34]]
    %v720 = vstv %s719
    %v721 = vmul.f32 %v684, %v720
    %v722 = vmul.f32 %v686, %v720
    %v725 = vrot.slane %v721, 2
    %v726 = vrot.slane %v722, 2
    %v727 = vsel %vm71, %v725, %v726
    %v729 = vadd.f32 %v707, %v727
    %s730 = sld [smem:[#allocation5 + $0x3d]]
    %v731 = vstv %s730
    %v732 = vmul.f32 %v684, %v731
    %v733 = vmul.f32 %v686, %v731
    %v736 = vrot.slane %v732, 2
    %v737 = vrot.slane %v733, 2
    %v738 = vsel %vm71, %v736, %v737
    %v740 = vadd.f32 %v718, %v738
    %s741 = sld [smem:[#allocation5 + $0x2f]]
    %v742 = vstv %s741
    %v743 = vmul.f32 %v623, %v742
    %v744 = vadd.f32 %v729, %v743
    %s745 = sld [smem:[#allocation5 + $0x38]]
    %v746 = vstv %s745
    %v747 = vmul.f32 %v623, %v746
    %v748 = vadd.f32 %v740, %v747
    %s749 = sld [smem:[#allocation5 + $0x32]]
    %v750 = vstv %s749
    %v751 = vmul.f32 %v623, %v750
    %v752 = vmul.f32 %v624, %v750
    %v755 = vrot.slane %v751, 1
    %v756 = vrot.slane %v752, 1
    %v757 = vsel %vm57, %v755, %v756
    %v759 = vadd.f32 %v744, %v757
    %s760 = sld [smem:[#allocation5 + $0x3b]]
    %v761 = vstv %s760
    %v762 = vmul.f32 %v623, %v761
    %v763 = vmul.f32 %v624, %v761
    %v766 = vrot.slane %v762, 1
    %v767 = vrot.slane %v763, 1
    %v768 = vsel %vm57, %v766, %v767
    %v770 = vadd.f32 %v748, %v768
    %s771 = sld [smem:[#allocation5 + $0x35]]
    %v772 = vstv %s771
    %v773 = vmul.f32 %v623, %v772
    %v774 = vmul.f32 %v624, %v772
    %v777 = vrot.slane %v773, 2
    %v778 = vrot.slane %v774, 2
    %v779 = vsel %vm71, %v777, %v778
    %v781 = vadd.f32 %v759, %v779
    %s782 = sld [smem:[#allocation5 + $0x3e]]
    %v783 = vstv %s782
    %v784 = vmul.f32 %v623, %v783
    %v785 = vmul.f32 %v624, %v783
    %v788 = vrot.slane %v784, 2
    %v789 = vrot.slane %v785, 2
    %v790 = vsel %vm71, %v788, %v789
    %v792 = vadd.f32 %v770, %v790
    %v793 = vlaneseq
    %v794 = vand.u32 %v793, 127
    %vm795 = vcmp.ge.s32.totalorder %v794, 8
    %vm796 = vcmp.lt.s32.totalorder %v794, 40
    %vm797 = vmand %vm795, %vm796
    %vm798 = vcmp.ge.s32.totalorder %v794, 72
    %vm799 = vcmp.lt.s32.totalorder %v794, 104
    %vm800 = vmand %vm798, %vm799
    %vm801 = vmor %vm797, %vm800
    %v802 = vsel %vm801, 1.0, 0.0
    %s803 = sld [smem:[#allocation7 + $0x1]]
    %v804 = vstv %s803
    %v805 = vadd.f32 %v781, %v804
    %v806 = vmul.f32 %v805, 0.5
    %v807 = vtanh.pop %v806
    %v808 = vadd.f32 %v807, 1.0
    %v809 = vmul.f32 %v808, 0.5
    %v810 = vmul.f32 %v809, %v802
    %811 = vst [vmem:[#allocation3 + $0x2] sm:$0xff] %v810
    %s812 = sld [smem:[#allocation7 + $0x2]]
    %v813 = vstv %s812
    %v814 = vadd.f32 %v792, %v813
    %v815 = vmul.f32 %v814, 0.5
    %v816 = vtanh.pop %v815
    %v817 = vadd.f32 %v816, 1.0
    %v818 = vmul.f32 %v817, 0.5
    %v819 = vmul.f32 %v818, %v802
    %s820 = scalar_lea.vmem [#allocation3], 16
    %821 = vst [vmem:[%s820 + $0x2] sm:$0xff] %v819
    %v822 = vld [vmem:[#allocation3] sm:$0xff]
    %v823 = vld [vmem:[#allocation3 + $0x8] sm:$0xf]
    %826 = vrot.lane.b32.xlu0 %v822, 8
    %v827 = vpop.permute.xlu0 %826
    %828 = vrot.lane.b32.xlu0 %v823, 8
    %v829 = vpop.permute.xlu0 %828
    %s832 = sld [smem:[#allocation5 + $0x3f]]
    %v833 = vstv %s832
    %v834 = vmul.f32 %v827, %v833
    %v835 = vmul.f32 %v829, %v833
    %s836 = sld [smem:[#allocation5 + $0x42]]
    %v837 = vstv %s836
    %v838 = vmul.f32 %v827, %v837
    %v839 = vmul.f32 %v829, %v837
    %v842 = vrot.slane %v838, 1
    %v843 = vrot.slane %v839, 1
    %v844 = vsel %vm57, %v842, %v843
    %v847 = vadd.f32 %v834, %v844
    %v848 = vadd.f32 %v835, %v843
    %s849 = sld [smem:[#allocation5 + $0x45]]
    %v850 = vstv %s849
    %v851 = vmul.f32 %v827, %v850
    %v852 = vmul.f32 %v829, %v850
    %v855 = vrot.slane %v851, 2
    %v856 = vrot.slane %v852, 2
    %v857 = vsel %vm71, %v855, %v856
    %v860 = vadd.f32 %v847, %v857
    %v861 = vadd.f32 %v848, %v856
    %862 = vrot.lane.b32.xlu0 %v822, 4
    %v863 = vpop.permute.xlu0 %862
    %864 = vrot.lane.b32.xlu0 %v823, 4
    %v865 = vpop.permute.xlu0 %864
    %s868 = sld [smem:[#allocation5 + $0x40]]
    %v869 = vstv %s868
    %v870 = vmul.f32 %v863, %v869
    %v871 = vmul.f32 %v865, %v869
    %v872 = vadd.f32 %v860, %v870
    %v873 = vadd.f32 %v861, %v871
    %s874 = sld [smem:[#allocation5 + $0x43]]
    %v875 = vstv %s874
    %v876 = vmul.f32 %v863, %v875
    %v877 = vmul.f32 %v865, %v875
    %v880 = vrot.slane %v876, 1
    %v881 = vrot.slane %v877, 1
    %v882 = vsel %vm57, %v880, %v881
    %v885 = vadd.f32 %v872, %v882
    %v886 = vadd.f32 %v873, %v881
    %s887 = sld [smem:[#allocation5 + $0x46]]
    %v888 = vstv %s887
    %v889 = vmul.f32 %v863, %v888
    %v890 = vmul.f32 %v865, %v888
    %v893 = vrot.slane %v889, 2
    %v894 = vrot.slane %v890, 2
    %v895 = vsel %vm71, %v893, %v894
    %v898 = vadd.f32 %v885, %v895
    %v899 = vadd.f32 %v886, %v894
    %s900 = sld [smem:[#allocation5 + $0x41]]
    %v901 = vstv %s900
    %v902 = vmul.f32 %v822, %v901
    %v903 = vmul.f32 %v823, %v901
    %v904 = vadd.f32 %v898, %v902
    %v905 = vadd.f32 %v899, %v903
    %s906 = sld [smem:[#allocation5 + $0x44]]
    %v907 = vstv %s906
    %v908 = vmul.f32 %v822, %v907
    %v909 = vmul.f32 %v823, %v907
    %v912 = vrot.slane %v908, 1
    %v913 = vrot.slane %v909, 1
    %v914 = vsel %vm57, %v912, %v913
    %v917 = vadd.f32 %v904, %v914
    %v918 = vadd.f32 %v905, %v913
    %s919 = sld [smem:[#allocation5 + $0x47]]
    %v920 = vstv %s919
    %v921 = vmul.f32 %v822, %v920
    %v922 = vmul.f32 %v823, %v920
    %v925 = vrot.slane %v921, 2
    %v926 = vrot.slane %v922, 2
    %v927 = vsel %vm71, %v925, %v926
    %v930 = vadd.f32 %v917, %v927
    %v931 = vadd.f32 %v918, %v926
    %v932 = vld [vmem:[%s820] sm:$0xff]
    %v933 = vld [vmem:[%s820 + $0x8] sm:$0xf]
    %936 = vrot.lane.b32.xlu0 %v932, 8
    %v937 = vpop.permute.xlu0 %936
    %938 = vrot.lane.b32.xlu0 %v933, 8
    %v939 = vpop.permute.xlu0 %938
    %s942 = sld [smem:[#allocation5 + $0x48]]
    %v943 = vstv %s942
    %v944 = vmul.f32 %v937, %v943
    %v945 = vmul.f32 %v939, %v943
    %v946 = vadd.f32 %v930, %v944
    %v947 = vadd.f32 %v931, %v945
    %s948 = sld [smem:[#allocation5 + $0x4b]]
    %v949 = vstv %s948
    %v950 = vmul.f32 %v937, %v949
    %v951 = vmul.f32 %v939, %v949
    %v954 = vrot.slane %v950, 1
    %v955 = vrot.slane %v951, 1
    %v956 = vsel %vm57, %v954, %v955
    %v959 = vadd.f32 %v946, %v956
    %v960 = vadd.f32 %v947, %v955
    %s961 = sld [smem:[#allocation5 + $0x4e]]
    %v962 = vstv %s961
    %v963 = vmul.f32 %v937, %v962
    %v964 = vmul.f32 %v939, %v962
    %v967 = vrot.slane %v963, 2
    %v968 = vrot.slane %v964, 2
    %v969 = vsel %vm71, %v967, %v968
    %v972 = vadd.f32 %v959, %v969
    %v973 = vadd.f32 %v960, %v968
    %974 = vrot.lane.b32.xlu0 %v932, 4
    %v975 = vpop.permute.xlu0 %974
    %976 = vrot.lane.b32.xlu0 %v933, 4
    %v977 = vpop.permute.xlu0 %976
    %s980 = sld [smem:[#allocation5 + $0x49]]
    %v981 = vstv %s980
    %v982 = vmul.f32 %v975, %v981
    %v983 = vmul.f32 %v977, %v981
    %v984 = vadd.f32 %v972, %v982
    %v985 = vadd.f32 %v973, %v983
    %s986 = sld [smem:[#allocation5 + $0x4c]]
    %v987 = vstv %s986
    %v988 = vmul.f32 %v975, %v987
    %v989 = vmul.f32 %v977, %v987
    %v992 = vrot.slane %v988, 1
    %v993 = vrot.slane %v989, 1
    %v994 = vsel %vm57, %v992, %v993
    %v997 = vadd.f32 %v984, %v994
    %v998 = vadd.f32 %v985, %v993
    %s999 = sld [smem:[#allocation5 + $0x4f]]
    %v1000 = vstv %s999
    %v1001 = vmul.f32 %v975, %v1000
    %v1002 = vmul.f32 %v977, %v1000
    %v1005 = vrot.slane %v1001, 2
    %v1006 = vrot.slane %v1002, 2
    %v1007 = vsel %vm71, %v1005, %v1006
    %v1010 = vadd.f32 %v997, %v1007
    %v1011 = vadd.f32 %v998, %v1006
    %s1012 = sld [smem:[#allocation5 + $0x4a]]
    %v1013 = vstv %s1012
    %v1014 = vmul.f32 %v932, %v1013
    %v1015 = vmul.f32 %v933, %v1013
    %v1016 = vadd.f32 %v1010, %v1014
    %v1017 = vadd.f32 %v1011, %v1015
    %s1018 = sld [smem:[#allocation5 + $0x4d]]
    %v1019 = vstv %s1018
    %v1020 = vmul.f32 %v932, %v1019
    %v1021 = vmul.f32 %v933, %v1019
    %v1024 = vrot.slane %v1020, 1
    %v1025 = vrot.slane %v1021, 1
    %v1026 = vsel %vm57, %v1024, %v1025
    %v1029 = vadd.f32 %v1016, %v1026
    %v1030 = vadd.f32 %v1017, %v1025
    %s1031 = sld [smem:[#allocation5 + $0x50]]
    %v1032 = vstv %s1031
    %v1033 = vmul.f32 %v932, %v1032
    %v1034 = vmul.f32 %v933, %v1032
    %v1037 = vrot.slane %v1033, 2
    %v1038 = vrot.slane %v1034, 2
    %v1039 = vsel %vm71, %v1037, %v1038
    %v1042 = vadd.f32 %v1029, %v1039
    %v1043 = vadd.f32 %v1030, %v1038
    %vm1044 = vcmp.lt.s32.totalorder %v794, 48
    %vm1045 = vmand %vm795, %vm1044
    %vm1046 = vcmp.lt.s32.totalorder %v794, 112
    %vm1047 = vmand %vm798, %vm1046
    %vm1048 = vmor %vm1045, %vm1047
    %v1049 = vsel %vm1048, 1.0, 0.0
    %s1050 = sld [smem:[#allocation7 + $0x3]]
    %v1051 = vstv %s1050
    %v1052 = vadd.f32 %v1042, %v1051
    %v1053 = vadd.f32 %v1043, %v1051
    %v1054 = vmul.f32 %v1052, 0.5
    %v1055 = vmul.f32 %v1053, 0.5
    %v1056 = vtanh.pop %v1054
    %v1057 = vtanh.pop %v1055
    %v1058 = vadd.f32 %v1056, 1.0
    %v1059 = vadd.f32 %v1057, 1.0
    %v1060 = vmul.f32 %v1058, 0.5
    %v1061 = vmul.f32 %v1059, 0.5
    %v1062 = vmul.f32 %v1060, %v1049
    %v1063 = vmul.f32 %v1061, %v1049
    %1064 = vst [vmem:[#allocation4 + $0x2] sm:$0xff] %v1062
    %1065 = vst [vmem:[#allocation4 + $0xa] sm:$0x3] %v1063
    %v1066 = vld [vmem:[#allocation4] sm:$0xff]
    %v1067 = vld [vmem:[#allocation4 + $0x8] sm:$0x3f]
    %s1068 = sld [smem:[#allocation5 + $0x51]]
    %v1069 = vstv %s1068
    %v1070 = vmul.f32 %v1066, %v1069
    %v1071 = vmul.f32 %v1067, %v1069
    %s1072 = sld [smem:[#allocation5 + $0x5a]]
    %v1073 = vstv %s1072
    %v1074 = vmul.f32 %v1066, %v1073
    %v1075 = vmul.f32 %v1067, %v1073
    %s1076 = sld [smem:[#allocation5 + $0x63]]
    %v1077 = vstv %s1076
    %v1078 = vmul.f32 %v1066, %v1077
    %v1079 = vmul.f32 %v1067, %v1077
    %s1080 = sld [smem:[#allocation5 + $0x6c]]
    %v1081 = vstv %s1080
    %v1082 = vmul.f32 %v1066, %v1081
    %v1083 = vmul.f32 %v1067, %v1081
    %s1084 = sld [smem:[#allocation5 + $0x75]]
    %v1085 = vstv %s1084
    %v1086 = vmul.f32 %v1066, %v1085
    %v1087 = vmul.f32 %v1067, %v1085
    %s1088 = sld [smem:[#allocation5 + $0x54]]
    %v1089 = vstv %s1088
    %v1090 = vmul.f32 %v1066, %v1089
    %v1091 = vmul.f32 %v1067, %v1089
    %v1094 = vrot.slane %v1090, 1
    %v1095 = vrot.slane %v1091, 1
    %v1096 = vsel %vm57, %v1094, %v1095
    %v1099 = vadd.f32 %v1070, %v1096
    %v1100 = vadd.f32 %v1071, %v1095
    %s1101 = sld [smem:[#allocation5 + $0x5d]]
    %v1102 = vstv %s1101
    %v1103 = vmul.f32 %v1066, %v1102
    %v1104 = vmul.f32 %v1067, %v1102
    %v1107 = vrot.slane %v1103, 1
    %v1108 = vrot.slane %v1104, 1
    %v1109 = vsel %vm57, %v1107, %v1108
    %v1112 = vadd.f32 %v1074, %v1109
    %v1113 = vadd.f32 %v1075, %v1108
    %s1114 = sld [smem:[#allocation5 + $0x66]]
    %v1115 = vstv %s1114
    %v1116 = vmul.f32 %v1066, %v1115
    %v1117 = vmul.f32 %v1067, %v1115
    %v1120 = vrot.slane %v1116, 1
    %v1121 = vrot.slane %v1117, 1
    %v1122 = vsel %vm57, %v1120, %v1121
    %v1125 = vadd.f32 %v1078, %v1122
    %v1126 = vadd.f32 %v1079, %v1121
    %s1127 = sld [smem:[#allocation5 + $0x6f]]
    %v1128 = vstv %s1127
    %v1129 = vmul.f32 %v1066, %v1128
    %v1130 = vmul.f32 %v1067, %v1128
    %v1133 = vrot.slane %v1129, 1
    %v1134 = vrot.slane %v1130, 1
    %v1135 = vsel %vm57, %v1133, %v1134
    %v1138 = vadd.f32 %v1082, %v1135
    %v1139 = vadd.f32 %v1083, %v1134
    %s1140 = sld [smem:[#allocation5 + $0x78]]
    %v1141 = vstv %s1140
    %v1142 = vmul.f32 %v1066, %v1141
    %v1143 = vmul.f32 %v1067, %v1141
    %v1146 = vrot.slane %v1142, 1
    %v1147 = vrot.slane %v1143, 1
    %v1148 = vsel %vm57, %v1146, %v1147
    %v1151 = vadd.f32 %v1086, %v1148
    %v1152 = vadd.f32 %v1087, %v1147
    %s1153 = sld [smem:[#allocation5 + $0x57]]
    %v1154 = vstv %s1153
    %v1155 = vmul.f32 %v1066, %v1154
    %v1156 = vmul.f32 %v1067, %v1154
    %v1159 = vrot.slane %v1155, 2
    %v1160 = vrot.slane %v1156, 2
    %v1161 = vsel %vm71, %v1159, %v1160
    %v1164 = vadd.f32 %v1099, %v1161
    %v1165 = vadd.f32 %v1100, %v1160
    %s1166 = sld [smem:[#allocation5 + $0x60]]
    %v1167 = vstv %s1166
    %v1168 = vmul.f32 %v1066, %v1167
    %v1169 = vmul.f32 %v1067, %v1167
    %v1172 = vrot.slane %v1168, 2
    %v1173 = vrot.slane %v1169, 2
    %v1174 = vsel %vm71, %v1172, %v1173
    %v1177 = vadd.f32 %v1112, %v1174
    %v1178 = vadd.f32 %v1113, %v1173
    %s1179 = sld [smem:[#allocation5 + $0x69]]
    %v1180 = vstv %s1179
    %v1181 = vmul.f32 %v1066, %v1180
    %v1182 = vmul.f32 %v1067, %v1180
    %v1185 = vrot.slane %v1181, 2
    %v1186 = vrot.slane %v1182, 2
    %v1187 = vsel %vm71, %v1185, %v1186
    %v1190 = vadd.f32 %v1125, %v1187
    %v1191 = vadd.f32 %v1126, %v1186
    %s1192 = sld [smem:[#allocation5 + $0x72]]
    %v1193 = vstv %s1192
    %v1194 = vmul.f32 %v1066, %v1193
    %v1195 = vmul.f32 %v1067, %v1193
    %v1198 = vrot.slane %v1194, 2
    %v1199 = vrot.slane %v1195, 2
    %v1200 = vsel %vm71, %v1198, %v1199
    %v1203 = vadd.f32 %v1138, %v1200
    %v1204 = vadd.f32 %v1139, %v1199
    %s1205 = sld [smem:[#allocation5 + $0x7b]]
    %v1206 = vstv %s1205
    %v1207 = vmul.f32 %v1066, %v1206
    %v1208 = vmul.f32 %v1067, %v1206
    %v1211 = vrot.slane %v1207, 2
    %v1212 = vrot.slane %v1208, 2
    %v1213 = vsel %vm71, %v1211, %v1212
    %v1216 = vadd.f32 %v1151, %v1213
    %v1217 = vadd.f32 %v1152, %v1212
    %1220 = vrot.lane.b32.xlu0 %v1066, 124
    %v1221 = vpop.permute.xlu0 %1220
    %1222 = vrot.lane.b32.xlu0 %v1067, 124
    %v1223 = vpop.permute.xlu0 %1222
    %s1226 = sld [smem:[#allocation5 + $0x52]]
    %v1227 = vstv %s1226
    %v1228 = vmul.f32 %v1221, %v1227
    %v1229 = vmul.f32 %v1223, %v1227
    %v1230 = vadd.f32 %v1164, %v1228
    %v1231 = vadd.f32 %v1165, %v1229
    %s1232 = sld [smem:[#allocation5 + $0x5b]]
    %v1233 = vstv %s1232
    %v1234 = vmul.f32 %v1221, %v1233
    %v1235 = vmul.f32 %v1223, %v1233
    %v1236 = vadd.f32 %v1177, %v1234
    %v1237 = vadd.f32 %v1178, %v1235
    %s1238 = sld [smem:[#allocation5 + $0x64]]
    %v1239 = vstv %s1238
    %v1240 = vmul.f32 %v1221, %v1239
    %v1241 = vmul.f32 %v1223, %v1239
    %v1242 = vadd.f32 %v1190, %v1240
    %v1243 = vadd.f32 %v1191, %v1241
    %s1244 = sld [smem:[#allocation5 + $0x6d]]
    %v1245 = vstv %s1244
    %v1246 = vmul.f32 %v1221, %v1245
    %v1247 = vmul.f32 %v1223, %v1245
    %v1248 = vadd.f32 %v1203, %v1246
    %v1249 = vadd.f32 %v1204, %v1247
    %s1250 = sld [smem:[#allocation5 + $0x76]]
    %v1251 = vstv %s1250
    %v1252 = vmul.f32 %v1221, %v1251
    %v1253 = vmul.f32 %v1223, %v1251
    %v1254 = vadd.f32 %v1216, %v1252
    %v1255 = vadd.f32 %v1217, %v1253
    %s1256 = sld [smem:[#allocation5 + $0x55]]
    %v1257 = vstv %s1256
    %v1258 = vmul.f32 %v1221, %v1257
    %v1259 = vmul.f32 %v1223, %v1257
    %v1262 = vrot.slane %v1258, 1
    %v1263 = vrot.slane %v1259, 1
    %v1264 = vsel %vm57, %v1262, %v1263
    %v1267 = vadd.f32 %v1230, %v1264
    %v1268 = vadd.f32 %v1231, %v1263
    %s1269 = sld [smem:[#allocation5 + $0x5e]]
    %v1270 = vstv %s1269
    %v1271 = vmul.f32 %v1221, %v1270
    %v1272 = vmul.f32 %v1223, %v1270
    %v1275 = vrot.slane %v1271, 1
    %v1276 = vrot.slane %v1272, 1
    %v1277 = vsel %vm57, %v1275, %v1276
    %v1280 = vadd.f32 %v1236, %v1277
    %v1281 = vadd.f32 %v1237, %v1276
    %s1282 = sld [smem:[#allocation5 + $0x67]]
    %v1283 = vstv %s1282
    %v1284 = vmul.f32 %v1221, %v1283
    %v1285 = vmul.f32 %v1223, %v1283
    %v1288 = vrot.slane %v1284, 1
    %v1289 = vrot.slane %v1285, 1
    %v1290 = vsel %vm57, %v1288, %v1289
    %v1293 = vadd.f32 %v1242, %v1290
    %v1294 = vadd.f32 %v1243, %v1289
    %s1295 = sld [smem:[#allocation5 + $0x70]]
    %v1296 = vstv %s1295
    %v1297 = vmul.f32 %v1221, %v1296
    %v1298 = vmul.f32 %v1223, %v1296
    %v1301 = vrot.slane %v1297, 1
    %v1302 = vrot.slane %v1298, 1
    %v1303 = vsel %vm57, %v1301, %v1302
    %v1306 = vadd.f32 %v1248, %v1303
    %v1307 = vadd.f32 %v1249, %v1302
    %s1308 = sld [smem:[#allocation5 + $0x79]]
    %v1309 = vstv %s1308
    %v1310 = vmul.f32 %v1221, %v1309
    %v1311 = vmul.f32 %v1223, %v1309
    %v1314 = vrot.slane %v1310, 1
    %v1315 = vrot.slane %v1311, 1
    %v1316 = vsel %vm57, %v1314, %v1315
    %v1319 = vadd.f32 %v1254, %v1316
    %v1320 = vadd.f32 %v1255, %v1315
    %s1321 = sld [smem:[#allocation5 + $0x58]]
    %v1322 = vstv %s1321
    %v1323 = vmul.f32 %v1221, %v1322
    %v1324 = vmul.f32 %v1223, %v1322
    %v1327 = vrot.slane %v1323, 2
    %v1328 = vrot.slane %v1324, 2
    %v1329 = vsel %vm71, %v1327, %v1328
    %v1332 = vadd.f32 %v1267, %v1329
    %v1333 = vadd.f32 %v1268, %v1328
    %s1334 = sld [smem:[#allocation5 + $0x61]]
    %v1335 = vstv %s1334
    %v1336 = vmul.f32 %v1221, %v1335
    %v1337 = vmul.f32 %v1223, %v1335
    %v1340 = vrot.slane %v1336, 2
    %v1341 = vrot.slane %v1337, 2
    %v1342 = vsel %vm71, %v1340, %v1341
    %v1345 = vadd.f32 %v1280, %v1342
    %v1346 = vadd.f32 %v1281, %v1341
    %s1347 = sld [smem:[#allocation5 + $0x6a]]
    %v1348 = vstv %s1347
    %v1349 = vmul.f32 %v1221, %v1348
    %v1350 = vmul.f32 %v1223, %v1348
    %v1353 = vrot.slane %v1349, 2
    %v1354 = vrot.slane %v1350, 2
    %v1355 = vsel %vm71, %v1353, %v1354
    %v1358 = vadd.f32 %v1293, %v1355
    %v1359 = vadd.f32 %v1294, %v1354
    %s1360 = sld [smem:[#allocation5 + $0x73]]
    %v1361 = vstv %s1360
    %v1362 = vmul.f32 %v1221, %v1361
    %v1363 = vmul.f32 %v1223, %v1361
    %v1366 = vrot.slane %v1362, 2
    %v1367 = vrot.slane %v1363, 2
    %v1368 = vsel %vm71, %v1366, %v1367
    %v1371 = vadd.f32 %v1306, %v1368
    %v1372 = vadd.f32 %v1307, %v1367
    %s1373 = sld [smem:[#allocation5 + $0x7c]]
    %v1374 = vstv %s1373
    %v1375 = vmul.f32 %v1221, %v1374
    %v1376 = vmul.f32 %v1223, %v1374
    %v1379 = vrot.slane %v1375, 2
    %v1380 = vrot.slane %v1376, 2
    %v1381 = vsel %vm71, %v1379, %v1380
    %v1384 = vadd.f32 %v1319, %v1381
    %v1385 = vadd.f32 %v1320, %v1380
    %1386 = vrot.lane.b32.xlu0 %v1066, 120
    %v1387 = vpop.permute.xlu0 %1386
    %1388 = vrot.lane.b32.xlu0 %v1067, 120
    %v1389 = vpop.permute.xlu0 %1388
    %s1392 = sld [smem:[#allocation5 + $0x53]]
    %v1393 = vstv %s1392
    %v1394 = vmul.f32 %v1387, %v1393
    %v1395 = vmul.f32 %v1389, %v1393
    %v1396 = vadd.f32 %v1332, %v1394
    %v1397 = vadd.f32 %v1333, %v1395
    %s1398 = sld [smem:[#allocation5 + $0x5c]]
    %v1399 = vstv %s1398
    %v1400 = vmul.f32 %v1387, %v1399
    %v1401 = vmul.f32 %v1389, %v1399
    %v1402 = vadd.f32 %v1345, %v1400
    %v1403 = vadd.f32 %v1346, %v1401
    %s1404 = sld [smem:[#allocation5 + $0x65]]
    %v1405 = vstv %s1404
    %v1406 = vmul.f32 %v1387, %v1405
    %v1407 = vmul.f32 %v1389, %v1405
    %v1408 = vadd.f32 %v1358, %v1406
    %v1409 = vadd.f32 %v1359, %v1407
    %s1410 = sld [smem:[#allocation5 + $0x6e]]
    %v1411 = vstv %s1410
    %v1412 = vmul.f32 %v1387, %v1411
    %v1413 = vmul.f32 %v1389, %v1411
    %v1414 = vadd.f32 %v1371, %v1412
    %v1415 = vadd.f32 %v1372, %v1413
    %s1416 = sld [smem:[#allocation5 + $0x77]]
    %v1417 = vstv %s1416
    %v1418 = vmul.f32 %v1387, %v1417
    %v1419 = vmul.f32 %v1389, %v1417
    %v1420 = vadd.f32 %v1384, %v1418
    %v1421 = vadd.f32 %v1385, %v1419
    %s1422 = sld [smem:[#allocation5 + $0x56]]
    %v1423 = vstv %s1422
    %v1424 = vmul.f32 %v1387, %v1423
    %v1425 = vmul.f32 %v1389, %v1423
    %v1428 = vrot.slane %v1424, 1
    %v1429 = vrot.slane %v1425, 1
    %v1430 = vsel %vm57, %v1428, %v1429
    %v1433 = vadd.f32 %v1396, %v1430
    %v1434 = vadd.f32 %v1397, %v1429
    %s1435 = sld [smem:[#allocation5 + $0x5f]]
    %v1436 = vstv %s1435
    %v1437 = vmul.f32 %v1387, %v1436
    %v1438 = vmul.f32 %v1389, %v1436
    %v1441 = vrot.slane %v1437, 1
    %v1442 = vrot.slane %v1438, 1
    %v1443 = vsel %vm57, %v1441, %v1442
    %v1446 = vadd.f32 %v1402, %v1443
    %v1447 = vadd.f32 %v1403, %v1442
    %s1448 = sld [smem:[#allocation5 + $0x68]]
    %v1449 = vstv %s1448
    %v1450 = vmul.f32 %v1387, %v1449
    %v1451 = vmul.f32 %v1389, %v1449
    %v1454 = vrot.slane %v1450, 1
    %v1455 = vrot.slane %v1451, 1
    %v1456 = vsel %vm57, %v1454, %v1455
    %v1459 = vadd.f32 %v1408, %v1456
    %v1460 = vadd.f32 %v1409, %v1455
    %s1461 = sld [smem:[#allocation5 + $0x71]]
    %v1462 = vstv %s1461
    %v1463 = vmul.f32 %v1387, %v1462
    %v1464 = vmul.f32 %v1389, %v1462
    %v1467 = vrot.slane %v1463, 1
    %v1468 = vrot.slane %v1464, 1
    %v1469 = vsel %vm57, %v1467, %v1468
    %v1472 = vadd.f32 %v1414, %v1469
    %v1473 = vadd.f32 %v1415, %v1468
    %s1474 = sld [smem:[#allocation5 + $0x7a]]
    %v1475 = vstv %s1474
    %v1476 = vmul.f32 %v1387, %v1475
    %v1477 = vmul.f32 %v1389, %v1475
    %v1480 = vrot.slane %v1476, 1
    %v1481 = vrot.slane %v1477, 1
    %v1482 = vsel %vm57, %v1480, %v1481
    %v1485 = vadd.f32 %v1420, %v1482
    %v1486 = vadd.f32 %v1421, %v1481
    %s1487 = sld [smem:[#allocation5 + $0x59]]
    %v1488 = vstv %s1487
    %v1489 = vmul.f32 %v1387, %v1488
    %v1490 = vmul.f32 %v1389, %v1488
    %v1493 = vrot.slane %v1489, 2
    %v1494 = vrot.slane %v1490, 2
    %v1495 = vsel %vm71, %v1493, %v1494
    %v1498 = vadd.f32 %v1433, %v1495
    %v1499 = vadd.f32 %v1434, %v1494
    %s1500 = sld [smem:[#allocation5 + $0x62]]
    %v1501 = vstv %s1500
    %v1502 = vmul.f32 %v1387, %v1501
    %v1503 = vmul.f32 %v1389, %v1501
    %v1506 = vrot.slane %v1502, 2
    %v1507 = vrot.slane %v1503, 2
    %v1508 = vsel %vm71, %v1506, %v1507
    %v1511 = vadd.f32 %v1446, %v1508
    %v1512 = vadd.f32 %v1447, %v1507
    %s1513 = sld [smem:[#allocation5 + $0x6b]]
    %v1514 = vstv %s1513
    %v1515 = vmul.f32 %v1387, %v1514
    %v1516 = vmul.f32 %v1389, %v1514
    %v1519 = vrot.slane %v1515, 2
    %v1520 = vrot.slane %v1516, 2
    %v1521 = vsel %vm71, %v1519, %v1520
    %v1524 = vadd.f32 %v1459, %v1521
    %v1525 = vadd.f32 %v1460, %v1520
    %s1526 = sld [smem:[#allocation5 + $0x74]]
    %v1527 = vstv %s1526
    %v1528 = vmul.f32 %v1387, %v1527
    %v1529 = vmul.f32 %v1389, %v1527
    %v1532 = vrot.slane %v1528, 2
    %v1533 = vrot.slane %v1529, 2
    %v1534 = vsel %vm71, %v1532, %v1533
    %v1537 = vadd.f32 %v1472, %v1534
    %v1538 = vadd.f32 %v1473, %v1533
    %s1539 = sld [smem:[#allocation5 + $0x7d]]
    %v1540 = vstv %s1539
    %v1541 = vmul.f32 %v1387, %v1540
    %v1542 = vmul.f32 %v1389, %v1540
    %v1545 = vrot.slane %v1541, 2
    %v1546 = vrot.slane %v1542, 2
    %v1547 = vsel %vm71, %v1545, %v1546
    %v1550 = vadd.f32 %v1485, %v1547
    %v1551 = vadd.f32 %v1486, %v1546
    %s1552 = sld [smem:[#allocation7 + $0x4]]
    %v1553 = vstv %s1552
    %v1554 = vadd.f32 %v1498, %v1553
    %v1555 = vadd.f32 %v1499, %v1553
    %v1556 = vmul.f32 %v1554, 0.5
    %v1557 = vmul.f32 %v1555, 0.5
    %v1558 = vtanh.pop %v1556
    %v1559 = vtanh.pop %v1557
    %v1560 = vadd.f32 %v1558, 1.0
    %v1561 = vadd.f32 %v1559, 1.0
    %v1562 = vmul.f32 %v1560, 0.5
    %v1563 = vmul.f32 %v1561, 0.5
    %1564 = vst [vmem:[%s3] sm:$0xff] %v1562
    %1565 = vst [vmem:[%s3 + $0x8] sm:$0xf] %v1563
    %s1566 = sld [smem:[#allocation7 + $0x5]]
    %v1567 = vstv %s1566
    %v1568 = vadd.f32 %v1511, %v1567
    %v1569 = vadd.f32 %v1512, %v1567
    %v1570 = vmul.f32 %v1568, 0.5
    %v1571 = vmul.f32 %v1569, 0.5
    %v1572 = vtanh.pop %v1570
    %v1573 = vtanh.pop %v1571
    %v1574 = vadd.f32 %v1572, 1.0
    %v1575 = vadd.f32 %v1573, 1.0
    %v1576 = vmul.f32 %v1574, 0.5
    %v1577 = vmul.f32 %v1575, 0.5
    %s1578 = scalar_lea.vmem %s3, 16
    %1579 = vst [vmem:[%s1578] sm:$0xff] %v1576
    %1580 = vst [vmem:[%s1578 + $0x8] sm:$0xf] %v1577
    %s1581 = sld [smem:[#allocation7 + $0x6]]
    %v1582 = vstv %s1581
    %v1583 = vadd.f32 %v1524, %v1582
    %v1584 = vadd.f32 %v1525, %v1582
    %v1585 = vmul.f32 %v1583, 0.5
    %v1586 = vmul.f32 %v1584, 0.5
    %v1587 = vtanh.pop %v1585
    %v1588 = vtanh.pop %v1586
    %v1589 = vadd.f32 %v1587, 1.0
    %v1590 = vadd.f32 %v1588, 1.0
    %v1591 = vmul.f32 %v1589, 0.5
    %v1592 = vmul.f32 %v1590, 0.5
    %s1593 = scalar_lea.vmem %s3, 32
    %1594 = vst [vmem:[%s1593] sm:$0xff] %v1591
    %1595 = vst [vmem:[%s1593 + $0x8] sm:$0xf] %v1592
    %s1596 = sld [smem:[#allocation7 + $0x7]]
    %v1597 = vstv %s1596
    %v1598 = vadd.f32 %v1537, %v1597
    %v1599 = vadd.f32 %v1538, %v1597
    %v1600 = vmul.f32 %v1598, 0.5
    %v1601 = vmul.f32 %v1599, 0.5
    %v1602 = vtanh.pop %v1600
    %v1603 = vtanh.pop %v1601
    %v1604 = vadd.f32 %v1602, 1.0
    %v1605 = vadd.f32 %v1603, 1.0
    %v1606 = vmul.f32 %v1604, 0.5
    %v1607 = vmul.f32 %v1605, 0.5
    %s1608 = scalar_lea.vmem %s3, 48
    %1609 = vst [vmem:[%s1608] sm:$0xff] %v1606
    %1610 = vst [vmem:[%s1608 + $0x8] sm:$0xf] %v1607
    %s1611 = sld [smem:[#allocation7 + $0x8]]
    %v1612 = vstv %s1611
    %v1613 = vadd.f32 %v1550, %v1612
    %v1614 = vadd.f32 %v1551, %v1612
    %v1615 = vmul.f32 %v1613, 0.5
    %v1616 = vmul.f32 %v1614, 0.5
    %v1617 = vtanh.pop %v1615
    %v1618 = vtanh.pop %v1616
    %v1619 = vadd.f32 %v1617, 1.0
    %v1620 = vadd.f32 %v1618, 1.0
    %v1621 = vmul.f32 %v1619, 0.5
    %v1622 = vmul.f32 %v1620, 0.5
    %s1623 = scalar_lea.vmem %s3, 64
    %1624 = vst [vmem:[%s1623] sm:$0xff] %v1621
    %1625 = vst [vmem:[%s1623 + $0x8] sm:$0xf] %v1622
    // Predicated region
    $region22: #{fwd.1} parent=1 // pred_check
      _
    $region23: #{fwd.1} parent=1 // pred_check_branch
      %1627 = sbr.rel (0) target = $region25
    $region24: #{fwd.1} parent=1 // pred_region
      _
    $region25: #{fwd.1} parent=1 // pred_fallthru
      _
    // Predicated region
    $region26: #{fwd.1} parent=1 // pred_check
      _
    $region27: #{fwd.1} parent=1 // pred_check_branch
      %1629 = sbr.rel (0) target = $region29
    $region28: #{fwd.1} parent=1 // pred_region
      _
    $region29: #{fwd.1} parent=1 // pred_fallthru
      _
    %1630 = vsyncpa [#allocation6], 1
    %1631 = vsyncpa [#allocation8], 1

</llo_original>
